<compile_context>
chip_gen: v7x
topology: tpu7x:2x2x1
jax: 0.10.0
libtpu: 0.0.40
codegen_flags: <defaults>
</compile_context>

<pallas_src>
import functools

import jax
import jax.numpy as jnp
from jax import lax
from jax.experimental import pallas as pl
from jax.experimental.pallas import tpu as pltpu


def _round_up(x, m):
    return ((x + m - 1) // m) * m


# ---------------------------------------------------------------------------
# Kernel
# ---------------------------------------------------------------------------
def _disc_kernel(x_ref, we_ref, be_ref, wih_ref, whh_ref, b_ref, wo_ref, bo_ref,
                 out_ref, gin_sc, *, seq_len, batch_pad, gate_pad):
    T, Bp, HP = seq_len, batch_pad, gate_pad

    # ---- input path hoisted out of the recurrence --------------------------
    # One batched matmul over all T timesteps: (T*Bp, Din_p) @ (Din_p, Dm_p)
    emb = jnp.dot(x_ref[...], we_ref[...], preferred_element_type=jnp.float32)
    emb = jnp.maximum(emb + be_ref[...], 0.0)                       # (T*Bp, Dm_p)
    # gates_in[t] = emb_t @ Wih + b  (independent of h -> precompute for all t).
    # Note: i/f/o columns of Wih/b are pre-scaled by 0.5 in pack_params().
    gin_sc[...] = (jnp.dot(emb, wih_ref[...], preferred_element_type=jnp.float32)
                   + b_ref[...])                                    # (T*Bp, 4*HP)

    # Loop-invariant recurrent weight: (HP, 4*HP) f32 = 64 KiB = 16 vregs at HP=64,
    # small enough to keep resident across the unrolled loop.
    whh = whh_ref[...]

    # Per-lane affine that turns a single tanh over all 4 gates into
    #   sigmoid on (i, f, o) lanes  [= 0.5*tanh(0.5*x) + 0.5, pre-scale folded into W]
    #   tanh    on (g) lanes.
    lane = lax.broadcasted_iota(jnp.int32, (1, 4 * HP), 1)
    a_vec = jnp.where(lane < 3 * HP, 0.5, 1.0)
    b_vec = jnp.where(lane < 3 * HP, 0.5, 0.0)

    # ---- sequential LSTM recurrence (h @ Whh + elementwise per step) --------
    def step(t, carry):
        h, c = carry
        row = pl.multiple_of(t * Bp, Bp)
        g_pre = (gin_sc[pl.ds(row, Bp), :]
                 + jnp.dot(h, whh, preferred_element_type=jnp.float32))  # (Bp, 4*HP)
        act = a_vec * jnp.tanh(g_pre) + b_vec       # single EUP push for all 4 gates
        i_g = act[:, 0 * HP:1 * HP]
        f_g = act[:, 1 * HP:2 * HP]
        o_g = act[:, 2 * HP:3 * HP]
        g_g = act[:, 3 * HP:4 * HP]
        c = f_g * c + i_g * g_g
        h = o_g * jnp.tanh(c)
        return (h, c)

    h0 = jnp.zeros((Bp, HP), jnp.float32)
    c0 = jnp.zeros((Bp, HP), jnp.float32)
    h_T, _ = lax.fori_loop(0, T, step, (h0, c0), unroll=True)

    # ---- classifier head on last hidden state (lane-dense store) ------------
    out_ref[...] = (jnp.dot(h_T, wo_ref[...], preferred_element_type=jnp.float32)
                    + bo_ref[...])


# ---------------------------------------------------------------------------
# One-time parameter packing (hoisted out of the per-call forward)
# ---------------------------------------------------------------------------
def pack_params(params):
    """Pack / pad / reorder / pre-scale the Discriminator weights once."""
    We, be, Wih, Whh, b, Wo, bo = params
    Din, Dm = We.shape
    H = Whh.shape[0]

    Din_p = _round_up(Din, 8)      # small pad only (keeps x DMA tiny)
    Dm_p = _round_up(Dm, 8)        # second-minor dims only need multiples of 8
    HP = _round_up(H, 8)           # dense gate packing (one HP slot per gate)
    Out_p = 128                    # lane-dense output store

    We_p = jnp.zeros((Din_p, Dm_p), jnp.float32).at[:Din, :Dm].set(We)
    be_p = jnp.zeros((1, Dm_p), jnp.float32).at[0, :Dm].set(be)

    # PyTorch gate order (i, f, g, o) -> packed order (i, f, o, g); the three
    # sigmoid gates (i, f, o) get their columns pre-scaled by 0.5 so a single
    # tanh in the kernel covers all four gates. Zero padding is inert.
    order = (0, 1, 3, 2)   # packed_gate_index -> pytorch_gate_index

    def pack_gate_cols(W, rows_pad):
        W = W.astype(jnp.float32)
        Wp = jnp.zeros((rows_pad, 4 * HP), jnp.float32)
        for gn, go in enumerate(order):
            blk = W[:, go * H:(go + 1) * H]
            if gn < 3:                      # i, f, o -> sigmoid pre-scale
                blk = 0.5 * blk
            Wp = Wp.at[:W.shape[0], gn * HP:gn * HP + H].set(blk)
        return Wp

    Wih_p = pack_gate_cols(Wih, Dm_p)                    # (Dm_p, 4*HP)
    Whh_p = pack_gate_cols(Whh, HP)                      # (HP, 4*HP)
    b_p = pack_gate_cols(b.reshape(1, 4 * H), 1)         # (1, 4*HP)

    Wo_p = jnp.zeros((HP, Out_p), jnp.float32).at[:H, :1].set(Wo)
    bo_p = jnp.zeros((1, Out_p), jnp.float32).at[0, :1].set(bo)

    # TODO(synk): on v6e/v7x, cast We_p/Wih_p/Whh_p (and x/emb/h) to bfloat16 for
    # the matmuls (keep f32 accumulation / elementwise) after re-validating tolerance.
    return (We_p, be_p, Wih_p, Whh_p, b_p, Wo_p, bo_p)


# ---------------------------------------------------------------------------
# Per-call forward (only pads x; weights arrive pre-packed)
# ---------------------------------------------------------------------------
@jax.jit
def discriminator_forward(x, packed):
    """x: (T, B, input_dim) float32, packed = pack_params(params). Returns (B, 1)."""
    We_p, be_p, Wih_p, Whh_p, b_p, Wo_p, bo_p = packed
    T, B, Din = x.shape
    Din_p, Dm_p = We_p.shape
    HP = Whh_p.shape[0]
    Out_p = Wo_p.shape[1]
    Bp = max(8, _round_up(B, 8))

    xp = (jnp.zeros((T, Bp, Din_p), jnp.float32)
          .at[:, :B, :Din].set(x)
          .reshape(T * Bp, Din_p))

    full = lambda i: (0, 0)

    flops = int(2 * T * Bp * (Din_p * Dm_p + Dm_p * 4 * HP + HP * 4 * HP)
                + 2 * Bp * HP * Out_p)
    transcendentals = int(T * Bp * 5 * HP)
    bytes_accessed = int(4 * (xp.size + We_p.size + be_p.size + Wih_p.size
                              + Whh_p.size + b_p.size + Wo_p.size + bo_p.size
                              + Bp * Out_p))

    out = pl.pallas_call(
        functools.partial(_disc_kernel, seq_len=T, batch_pad=Bp, gate_pad=HP),
        out_shape=jax.ShapeDtypeStruct((Bp, Out_p), jnp.float32),
        grid_spec=pltpu.PrefetchScalarGridSpec(
            num_scalar_prefetch=0,
            grid=(1,),                                   # single step; time loop in-kernel
            in_specs=[
                pl.BlockSpec((T * Bp, Din_p), full),      # x (all timesteps resident)
                pl.BlockSpec((Din_p, Dm_p), full),        # We
                pl.BlockSpec((1, Dm_p), full),            # be
                pl.BlockSpec((Dm_p, 4 * HP), full),       # Wih (gate-packed, pre-scaled)
                pl.BlockSpec((HP, 4 * HP), full),         # Whh (gate-packed, pre-scaled)
                pl.BlockSpec((1, 4 * HP), full),          # b = b_ih + b_hh (packed)
                pl.BlockSpec((HP, Out_p), full),          # Wo
                pl.BlockSpec((1, Out_p), full),           # bo
            ],
            out_specs=pl.BlockSpec((Bp, Out_p), full),
            scratch_shapes=[
                pltpu.VMEM((T * Bp, 4 * HP), jnp.float32),   # hoisted gates_in buffer
            ],
        ),
        compiler_params=pltpu.CompilerParams(
            dimension_semantics=("arbitrary",),
        ),
        cost_estimate=pl.CostEstimate(flops=flops,
                                      transcendentals=transcendentals,
                                      bytes_accessed=bytes_accessed),
    )(xp, We_p, be_p, Wih_p, Whh_p, b_p, Wo_p, bo_p)

    # TODO(synk): for non-toy batch on v7x, add a leading size-2 "parallel" grid axis
    # splitting Bp across the two TensorCores, and time-chunk gin_sc (64 MiB VMEM).
    # TODO(synk): batch multiple discriminator invocations caller-side so real rows
    # fill Bp (currently B=2 padded to 8; 75% of MXU/EUP work is on pad rows).
    return out[:B, :1]


# ---------------------------------------------------------------------------
# Pure-JAX reference (for correctness check)
# ---------------------------------------------------------------------------
def reference_forward(x, params, *, hidden_dim):
    We, be, Wih, Whh, b, Wo, bo = params
    T, B, _ = x.shape
    H = hidden_dim
    emb = jnp.maximum(x @ We + be, 0.0)  # (T, B, Dm)

    def step(carry, e_t):
        h, c = carry
        gates = e_t @ Wih + h @ Whh + b
        i_g, f_g, g_g, o_g = jnp.split(gates, 4, axis=-1)
        i_g = jax.nn.sigmoid(i_g)
        f_g = jax.nn.sigmoid(f_g)
        g_g = jnp.tanh(g_g)
        o_g = jax.nn.sigmoid(o_g)
        c = f_g * c + i_g * g_g
        h = o_g * jnp.tanh(c)
        return (h, c), None

    init = (jnp.zeros((B, H), jnp.float32), jnp.zeros((B, H), jnp.float32))
    (h_T, _), _ = lax.scan(step, init, emb)
    return h_T @ Wo + bo  # (B, 1)


# ---------------------------------------------------------------------------
# Deterministic parameter init (shapes per Discriminator.__init__)
# ---------------------------------------------------------------------------
def init_params(key, input_dim=2, mlp_dim=16, hidden_dim=64):
    ks = jax.random.split(key, 8)
    u = lambda k, shape, s: jax.random.uniform(k, shape, jnp.float32, -s, s)
    s_e = 1.0 / jnp.sqrt(input_dim)
    s_l = 1.0 / jnp.sqrt(hidden_dim)
    We = u(ks[0], (input_dim, mlp_dim), s_e)        # Linear(input_dim, mlp_dim).weight^T
    be = u(ks[1], (mlp_dim,), s_e)
    Wih = u(ks[2], (mlp_dim, 4 * hidden_dim), s_l)  # LSTM weight_ih^T (gate order i,f,g,o)
    Whh = u(ks[3], (hidden_dim, 4 * hidden_dim), s_l)
    b_ih = u(ks[4], (4 * hidden_dim,), s_l)
    b_hh = u(ks[5], (4 * hidden_dim,), s_l)
    Wo = u(ks[6], (hidden_dim, 1), s_l)             # Linear(hidden_dim, 1).weight^T
    bo = u(ks[7], (1,), s_l)
    return (We, be, Wih, Whh, b_ih + b_hh, Wo, bo)


if __name__ == "__main__":
    key = jax.random.PRNGKey(0)
    k_p, k_x = jax.random.split(key)

    seq_len, batch, input_dim = 8, 2, 2
    mlp_dim, hidden_dim = 16, 64

    params = init_params(k_p, input_dim, mlp_dim, hidden_dim)
    x = jax.random.normal(k_x, (seq_len, batch, input_dim), jnp.float32)

    # One-time weight packing (NOT on the per-forward path).
    packed = pack_params(params)
    packed = jax.tree_util.tree_map(jax.block_until_ready, packed)

    out = discriminator_forward(x, packed)
    out = jax.block_until_ready(out)

    ref = reference_forward(x, params, hidden_dim=hidden_dim)
    assert out.shape == (batch, 1)
    assert jnp.allclose(out, ref, atol=1e-4, rtol=1e-4), (out, ref)

    print("KERNEL_OK")
</pallas_src>

<mosaic_0001>
module attributes {stable_mosaic.version = 11 : i64} {
  func.func @_disc_kernel(%arg0: i32, %arg1: memref<64x8xf32, #tpu.memory_space<vmem>>, %arg2: memref<8x16xf32, #tpu.memory_space<vmem>>, %arg3: memref<1x16xf32, #tpu.memory_space<vmem>>, %arg4: memref<16x256xf32, #tpu.memory_space<vmem>>, %arg5: memref<64x256xf32, #tpu.memory_space<vmem>>, %arg6: memref<1x256xf32, #tpu.memory_space<vmem>>, %arg7: memref<64x128xf32, #tpu.memory_space<vmem>>, %arg8: memref<1x128xf32, #tpu.memory_space<vmem>>, %arg9: memref<8x128xf32, #tpu.memory_space<vmem>>, %arg10: memref<64x256xf32, #tpu.memory_space<vmem>>) attributes {dimension_semantics = [#tpu.dimension_semantics<arbitrary>], iteration_bounds = array<i64: 1>, scalar_prefetch = 0 : i64, scratch_operands = 1 : i64, tpu.core_type = #tpu.core_type<tc>, window_params = [{pipeline_mode = #tpu.pipeline_mode<synchronous>, transform_indices = @transform_0, window_bounds = array<i64: 64, 8>}, {pipeline_mode = #tpu.pipeline_mode<synchronous>, transform_indices = @transform_1, window_bounds = array<i64: 8, 16>}, {pipeline_mode = #tpu.pipeline_mode<synchronous>, transform_indices = @transform_2, window_bounds = array<i64: 1, 16>}, {pipeline_mode = #tpu.pipeline_mode<synchronous>, transform_indices = @transform_3, window_bounds = array<i64: 16, 256>}, {pipeline_mode = #tpu.pipeline_mode<synchronous>, transform_indices = @transform_4, window_bounds = array<i64: 64, 256>}, {pipeline_mode = #tpu.pipeline_mode<synchronous>, transform_indices = @transform_5, window_bounds = array<i64: 1, 256>}, {pipeline_mode = #tpu.pipeline_mode<synchronous>, transform_indices = @transform_6, window_bounds = array<i64: 64, 128>}, {pipeline_mode = #tpu.pipeline_mode<synchronous>, transform_indices = @transform_7, window_bounds = array<i64: 1, 128>}, {pipeline_mode = #tpu.pipeline_mode<synchronous>, transform_indices = @transform_8, window_bounds = array<i64: 8, 128>}]} {
    %c0 = arith.constant 0 : index
    %c0_0 = arith.constant 0 : index
    %0 = vector.load %arg1[%c0, %c0_0] : memref<64x8xf32, #tpu.memory_space<vmem>>, vector<64x8xf32>
    %c0_1 = arith.constant 0 : index
    %c0_2 = arith.constant 0 : index
    %1 = vector.load %arg2[%c0_1, %c0_2] : memref<8x16xf32, #tpu.memory_space<vmem>>, vector<8x16xf32>
    %cst = arith.constant dense<0.000000e+00> : vector<64x16xf32>
    %2 = tpu.matmul %0, %1, %cst {dimension_numbers = #tpu.dot_dimension_numbers<[1], [0], [0], [1], [0, 0, 1, 1], [], []>} : vector<64x8xf32>, vector<8x16xf32>, vector<64x16xf32> -> vector<64x16xf32>
    %c0_3 = arith.constant 0 : index
    %c0_4 = arith.constant 0 : index
    %3 = vector.load %arg3[%c0_3, %c0_4] : memref<1x16xf32, #tpu.memory_space<vmem>>, vector<1x16xf32>
    %4 = vector.broadcast %3 : vector<1x16xf32> to vector<64x16xf32>
    %5 = arith.addf %2, %4 : vector<64x16xf32>
    %cst_5 = arith.constant 0.000000e+00 : f32
    %6 = vector.broadcast %cst_5 : f32 to vector<64x16xf32>
    %7 = arith.maximumf %5, %6 : vector<64x16xf32>
    %c0_6 = arith.constant 0 : index
    %c0_7 = arith.constant 0 : index
    %8 = vector.load %arg4[%c0_6, %c0_7] : memref<16x256xf32, #tpu.memory_space<vmem>>, vector<16x256xf32>
    %cst_8 = arith.constant dense<0.000000e+00> : vector<64x256xf32>
    %9 = tpu.matmul %7, %8, %cst_8 {dimension_numbers = #tpu.dot_dimension_numbers<[1], [0], [0], [1], [0, 0, 1, 1], [], []>} : vector<64x16xf32>, vector<16x256xf32>, vector<64x256xf32> -> vector<64x256xf32>
    %c0_9 = arith.constant 0 : index
    %c0_10 = arith.constant 0 : index
    %10 = vector.load %arg6[%c0_9, %c0_10] : memref<1x256xf32, #tpu.memory_space<vmem>>, vector<1x256xf32>
    %11 = vector.broadcast %10 : vector<1x256xf32> to vector<64x256xf32>
    %12 = arith.addf %9, %11 : vector<64x256xf32>
    %c0_11 = arith.constant 0 : index
    %c0_12 = arith.constant 0 : index
    %13 = vector.load %arg10[%c0_11, %c0_12] : memref<64x256xf32, #tpu.memory_space<vmem>>, vector<64x256xf32>
    tpu.vector_store %arg10[%c0_11, %c0_12], %12 {strides = array<i32>} : memref<64x256xf32, #tpu.memory_space<vmem>>, vector<64x256xf32>,
    %c0_13 = arith.constant 0 : index
    %c0_14 = arith.constant 0 : index
    %14 = vector.load %arg5[%c0_13, %c0_14] : memref<64x256xf32, #tpu.memory_space<vmem>>, vector<64x256xf32>
    %15 = tpu.iota {dimensions = array<i32: 1>} : vector<1x256xi32>
    %c192_i32 = arith.constant 192 : i32
    %16 = vector.broadcast %c192_i32 : i32 to vector<1x256xi32>
    %17 = arith.cmpi slt, %15, %16 : vector<1x256xi32>
    %cst_15 = arith.constant 5.000000e-01 : f32
    %cst_16 = arith.constant 1.000000e+00 : f32
    %18 = vector.broadcast %cst_15 : f32 to vector<1x256xf32>
    %19 = vector.broadcast %cst_16 : f32 to vector<1x256xf32>
    %20 = arith.select %17, %18, %19 : vector<1x256xi1>, vector<1x256xf32>
    %c192_i32_17 = arith.constant 192 : i32
    %21 = vector.broadcast %c192_i32_17 : i32 to vector<1x256xi32>
    %22 = arith.cmpi slt, %15, %21 : vector<1x256xi32>
    %cst_18 = arith.constant 5.000000e-01 : f32
    %cst_19 = arith.constant 0.000000e+00 : f32
    %23 = vector.broadcast %cst_18 : f32 to vector<1x256xf32>
    %24 = vector.broadcast %cst_19 : f32 to vector<1x256xf32>
    %25 = arith.select %22, %23, %24 : vector<1x256xi1>, vector<1x256xf32>
    %cst_20 = arith.constant 0.000000e+00 : f32
    %26 = vector.broadcast %cst_20 : f32 to vector<8x64xf32>
    %cst_21 = arith.constant 0.000000e+00 : f32
    %27 = vector.broadcast %cst_21 : f32 to vector<8x64xf32>
    %c0_i32 = arith.constant 0 : i32
    %c8_i32 = arith.constant 8 : i32
    %28 = arith.muli %c0_i32, %c8_i32 : i32
    %29 = tpu.assume_multiple %28, 8 : i32
    %30 = arith.index_cast %29 : i32 to index
    %c0_22 = arith.constant 0 : index
    %31 = vector.load %arg10[%30, %c0_22] : memref<64x256xf32, #tpu.memory_space<vmem>>, vector<8x256xf32>
    %cst_23 = arith.constant dense<0.000000e+00> : vector<8x256xf32>
    %32 = tpu.matmul %26, %14, %cst_23 {dimension_numbers = #tpu.dot_dimension_numbers<[1], [0], [0], [1], [0, 0, 1, 1], [], []>} : vector<8x64xf32>, vector<64x256xf32>, vector<8x256xf32> -> vector<8x256xf32>
    %33 = arith.addf %31, %32 : vector<8x256xf32>
    %34 = math.tanh %33 : vector<8x256xf32>
    %35 = vector.broadcast %20 : vector<1x256xf32> to vector<8x256xf32>
    %36 = arith.mulf %35, %34 : vector<8x256xf32>
    %37 = vector.broadcast %25 : vector<1x256xf32> to vector<8x256xf32>
    %38 = arith.addf %36, %37 : vector<8x256xf32>
    %39 = vector.extract_strided_slice %38 {offsets = [0, 0], sizes = [8, 64], strides = [1, 1]} : vector<8x256xf32> to vector<8x64xf32>
    %40 = vector.extract_strided_slice %38 {offsets = [0, 64], sizes = [8, 64], strides = [1, 1]} : vector<8x256xf32> to vector<8x64xf32>
    %41 = vector.extract_strided_slice %38 {offsets = [0, 128], sizes = [8, 64], strides = [1, 1]} : vector<8x256xf32> to vector<8x64xf32>
    %42 = vector.extract_strided_slice %38 {offsets = [0, 192], sizes = [8, 64], strides = [1, 1]} : vector<8x256xf32> to vector<8x64xf32>
    %43 = arith.mulf %40, %27 : vector<8x64xf32>
    %44 = arith.mulf %39, %42 : vector<8x64xf32>
    %45 = arith.addf %43, %44 : vector<8x64xf32>
    %46 = math.tanh %45 : vector<8x64xf32>
    %47 = arith.mulf %41, %46 : vector<8x64xf32>
    %c1_i32 = arith.constant 1 : i32
    %c8_i32_24 = arith.constant 8 : i32
    %48 = arith.muli %c1_i32, %c8_i32_24 : i32
    %49 = tpu.assume_multiple %48, 8 : i32
    %50 = arith.index_cast %49 : i32 to index
    %c0_25 = arith.constant 0 : index
    %51 = vector.load %arg10[%50, %c0_25] : memref<64x256xf32, #tpu.memory_space<vmem>>, vector<8x256xf32>
    %cst_26 = arith.constant dense<0.000000e+00> : vector<8x256xf32>
    %52 = tpu.matmul %47, %14, %cst_26 {dimension_numbers = #tpu.dot_dimension_numbers<[1], [0], [0], [1], [0, 0, 1, 1], [], []>} : vector<8x64xf32>, vector<64x256xf32>, vector<8x256xf32> -> vector<8x256xf32>
    %53 = arith.addf %51, %52 : vector<8x256xf32>
    %54 = math.tanh %53 : vector<8x256xf32>
    %55 = vector.broadcast %20 : vector<1x256xf32> to vector<8x256xf32>
    %56 = arith.mulf %55, %54 : vector<8x256xf32>
    %57 = vector.broadcast %25 : vector<1x256xf32> to vector<8x256xf32>
    %58 = arith.addf %56, %57 : vector<8x256xf32>
    %59 = vector.extract_strided_slice %58 {offsets = [0, 0], sizes = [8, 64], strides = [1, 1]} : vector<8x256xf32> to vector<8x64xf32>
    %60 = vector.extract_strided_slice %58 {offsets = [0, 64], sizes = [8, 64], strides = [1, 1]} : vector<8x256xf32> to vector<8x64xf32>
    %61 = vector.extract_strided_slice %58 {offsets = [0, 128], sizes = [8, 64], strides = [1, 1]} : vector<8x256xf32> to vector<8x64xf32>
    %62 = vector.extract_strided_slice %58 {offsets = [0, 192], sizes = [8, 64], strides = [1, 1]} : vector<8x256xf32> to vector<8x64xf32>
    %63 = arith.mulf %60, %45 : vector<8x64xf32>
    %64 = arith.mulf %59, %62 : vector<8x64xf32>
    %65 = arith.addf %63, %64 : vector<8x64xf32>
    %66 = math.tanh %65 : vector<8x64xf32>
    %67 = arith.mulf %61, %66 : vector<8x64xf32>
    %c2_i32 = arith.constant 2 : i32
    %c8_i32_27 = arith.constant 8 : i32
    %68 = arith.muli %c2_i32, %c8_i32_27 : i32
    %69 = tpu.assume_multiple %68, 8 : i32
    %70 = arith.index_cast %69 : i32 to index
    %c0_28 = arith.constant 0 : index
    %71 = vector.load %arg10[%70, %c0_28] : memref<64x256xf32, #tpu.memory_space<vmem>>, vector<8x256xf32>
    %cst_29 = arith.constant dense<0.000000e+00> : vector<8x256xf32>
    %72 = tpu.matmul %67, %14, %cst_29 {dimension_numbers = #tpu.dot_dimension_numbers<[1], [0], [0], [1], [0, 0, 1, 1], [], []>} : vector<8x64xf32>, vector<64x256xf32>, vector<8x256xf32> -> vector<8x256xf32>
    %73 = arith.addf %71, %72 : vector<8x256xf32>
    %74 = math.tanh %73 : vector<8x256xf32>
    %75 = vector.broadcast %20 : vector<1x256xf32> to vector<8x256xf32>
    %76 = arith.mulf %75, %74 : vector<8x256xf32>
    %77 = vector.broadcast %25 : vector<1x256xf32> to vector<8x256xf32>
    %78 = arith.addf %76, %77 : vector<8x256xf32>
    %79 = vector.extract_strided_slice %78 {offsets = [0, 0], sizes = [8, 64], strides = [1, 1]} : vector<8x256xf32> to vector<8x64xf32>
    %80 = vector.extract_strided_slice %78 {offsets = [0, 64], sizes = [8, 64], strides = [1, 1]} : vector<8x256xf32> to vector<8x64xf32>
    %81 = vector.extract_strided_slice %78 {offsets = [0, 128], sizes = [8, 64], strides = [1, 1]} : vector<8x256xf32> to vector<8x64xf32>
    %82 = vector.extract_strided_slice %78 {offsets = [0, 192], sizes = [8, 64], strides = [1, 1]} : vector<8x256xf32> to vector<8x64xf32>
    %83 = arith.mulf %80, %65 : vector<8x64xf32>
    %84 = arith.mulf %79, %82 : vector<8x64xf32>
    %85 = arith.addf %83, %84 : vector<8x64xf32>
    %86 = math.tanh %85 : vector<8x64xf32>
    %87 = arith.mulf %81, %86 : vector<8x64xf32>
    %c3_i32 = arith.constant 3 : i32
    %c8_i32_30 = arith.constant 8 : i32
    %88 = arith.muli %c3_i32, %c8_i32_30 : i32
    %89 = tpu.assume_multiple %88, 8 : i32
    %90 = arith.index_cast %89 : i32 to index
    %c0_31 = arith.constant 0 : index
    %91 = vector.load %arg10[%90, %c0_31] : memref<64x256xf32, #tpu.memory_space<vmem>>, vector<8x256xf32>
    %cst_32 = arith.constant dense<0.000000e+00> : vector<8x256xf32>
    %92 = tpu.matmul %87, %14, %cst_32 {dimension_numbers = #tpu.dot_dimension_numbers<[1], [0], [0], [1], [0, 0, 1, 1], [], []>} : vector<8x64xf32>, vector<64x256xf32>, vector<8x256xf32> -> vector<8x256xf32>
    %93 = arith.addf %91, %92 : vector<8x256xf32>
    %94 = math.tanh %93 : vector<8x256xf32>
    %95 = vector.broadcast %20 : vector<1x256xf32> to vector<8x256xf32>
    %96 = arith.mulf %95, %94 : vector<8x256xf32>
    %97 = vector.broadcast %25 : vector<1x256xf32> to vector<8x256xf32>
    %98 = arith.addf %96, %97 : vector<8x256xf32>
    %99 = vector.extract_strided_slice %98 {offsets = [0, 0], sizes = [8, 64], strides = [1, 1]} : vector<8x256xf32> to vector<8x64xf32>
    %100 = vector.extract_strided_slice %98 {offsets = [0, 64], sizes = [8, 64], strides = [1, 1]} : vector<8x256xf32> to vector<8x64xf32>
    %101 = vector.extract_strided_slice %98 {offsets = [0, 128], sizes = [8, 64], strides = [1, 1]} : vector<8x256xf32> to vector<8x64xf32>
    %102 = vector.extract_strided_slice %98 {offsets = [0, 192], sizes = [8, 64], strides = [1, 1]} : vector<8x256xf32> to vector<8x64xf32>
    %103 = arith.mulf %100, %85 : vector<8x64xf32>
    %104 = arith.mulf %99, %102 : vector<8x64xf32>
    %105 = arith.addf %103, %104 : vector<8x64xf32>
    %106 = math.tanh %105 : vector<8x64xf32>
    %107 = arith.mulf %101, %106 : vector<8x64xf32>
    %c4_i32 = arith.constant 4 : i32
    %c8_i32_33 = arith.constant 8 : i32
    %108 = arith.muli %c4_i32, %c8_i32_33 : i32
    %109 = tpu.assume_multiple %108, 8 : i32
    %110 = arith.index_cast %109 : i32 to index
    %c0_34 = arith.constant 0 : index
    %111 = vector.load %arg10[%110, %c0_34] : memref<64x256xf32, #tpu.memory_space<vmem>>, vector<8x256xf32>
    %cst_35 = arith.constant dense<0.000000e+00> : vector<8x256xf32>
    %112 = tpu.matmul %107, %14, %cst_35 {dimension_numbers = #tpu.dot_dimension_numbers<[1], [0], [0], [1], [0, 0, 1, 1], [], []>} : vector<8x64xf32>, vector<64x256xf32>, vector<8x256xf32> -> vector<8x256xf32>
    %113 = arith.addf %111, %112 : vector<8x256xf32>
    %114 = math.tanh %113 : vector<8x256xf32>
    %115 = vector.broadcast %20 : vector<1x256xf32> to vector<8x256xf32>
    %116 = arith.mulf %115, %114 : vector<8x256xf32>
    %117 = vector.broadcast %25 : vector<1x256xf32> to vector<8x256xf32>
    %118 = arith.addf %116, %117 : vector<8x256xf32>
    %119 = vector.extract_strided_slice %118 {offsets = [0, 0], sizes = [8, 64], strides = [1, 1]} : vector<8x256xf32> to vector<8x64xf32>
    %120 = vector.extract_strided_slice %118 {offsets = [0, 64], sizes = [8, 64], strides = [1, 1]} : vector<8x256xf32> to vector<8x64xf32>
    %121 = vector.extract_strided_slice %118 {offsets = [0, 128], sizes = [8, 64], strides = [1, 1]} : vector<8x256xf32> to vector<8x64xf32>
    %122 = vector.extract_strided_slice %118 {offsets = [0, 192], sizes = [8, 64], strides = [1, 1]} : vector<8x256xf32> to vector<8x64xf32>
    %123 = arith.mulf %120, %105 : vector<8x64xf32>
    %124 = arith.mulf %119, %122 : vector<8x64xf32>
    %125 = arith.addf %123, %124 : vector<8x64xf32>
    %126 = math.tanh %125 : vector<8x64xf32>
    %127 = arith.mulf %121, %126 : vector<8x64xf32>
    %c5_i32 = arith.constant 5 : i32
    %c8_i32_36 = arith.constant 8 : i32
    %128 = arith.muli %c5_i32, %c8_i32_36 : i32
    %129 = tpu.assume_multiple %128, 8 : i32
    %130 = arith.index_cast %129 : i32 to index
    %c0_37 = arith.constant 0 : index
    %131 = vector.load %arg10[%130, %c0_37] : memref<64x256xf32, #tpu.memory_space<vmem>>, vector<8x256xf32>
    %cst_38 = arith.constant dense<0.000000e+00> : vector<8x256xf32>
    %132 = tpu.matmul %127, %14, %cst_38 {dimension_numbers = #tpu.dot_dimension_numbers<[1], [0], [0], [1], [0, 0, 1, 1], [], []>} : vector<8x64xf32>, vector<64x256xf32>, vector<8x256xf32> -> vector<8x256xf32>
    %133 = arith.addf %131, %132 : vector<8x256xf32>
    %134 = math.tanh %133 : vector<8x256xf32>
    %135 = vector.broadcast %20 : vector<1x256xf32> to vector<8x256xf32>
    %136 = arith.mulf %135, %134 : vector<8x256xf32>
    %137 = vector.broadcast %25 : vector<1x256xf32> to vector<8x256xf32>
    %138 = arith.addf %136, %137 : vector<8x256xf32>
    %139 = vector.extract_strided_slice %138 {offsets = [0, 0], sizes = [8, 64], strides = [1, 1]} : vector<8x256xf32> to vector<8x64xf32>
    %140 = vector.extract_strided_slice %138 {offsets = [0, 64], sizes = [8, 64], strides = [1, 1]} : vector<8x256xf32> to vector<8x64xf32>
    %141 = vector.extract_strided_slice %138 {offsets = [0, 128], sizes = [8, 64], strides = [1, 1]} : vector<8x256xf32> to vector<8x64xf32>
    %142 = vector.extract_strided_slice %138 {offsets = [0, 192], sizes = [8, 64], strides = [1, 1]} : vector<8x256xf32> to vector<8x64xf32>
    %143 = arith.mulf %140, %125 : vector<8x64xf32>
    %144 = arith.mulf %139, %142 : vector<8x64xf32>
    %145 = arith.addf %143, %144 : vector<8x64xf32>
    %146 = math.tanh %145 : vector<8x64xf32>
    %147 = arith.mulf %141, %146 : vector<8x64xf32>
    %c6_i32 = arith.constant 6 : i32
    %c8_i32_39 = arith.constant 8 : i32
    %148 = arith.muli %c6_i32, %c8_i32_39 : i32
    %149 = tpu.assume_multiple %148, 8 : i32
    %150 = arith.index_cast %149 : i32 to index
    %c0_40 = arith.constant 0 : index
    %151 = vector.load %arg10[%150, %c0_40] : memref<64x256xf32, #tpu.memory_space<vmem>>, vector<8x256xf32>
    %cst_41 = arith.constant dense<0.000000e+00> : vector<8x256xf32>
    %152 = tpu.matmul %147, %14, %cst_41 {dimension_numbers = #tpu.dot_dimension_numbers<[1], [0], [0], [1], [0, 0, 1, 1], [], []>} : vector<8x64xf32>, vector<64x256xf32>, vector<8x256xf32> -> vector<8x256xf32>
    %153 = arith.addf %151, %152 : vector<8x256xf32>
    %154 = math.tanh %153 : vector<8x256xf32>
    %155 = vector.broadcast %20 : vector<1x256xf32> to vector<8x256xf32>
    %156 = arith.mulf %155, %154 : vector<8x256xf32>
    %157 = vector.broadcast %25 : vector<1x256xf32> to vector<8x256xf32>
    %158 = arith.addf %156, %157 : vector<8x256xf32>
    %159 = vector.extract_strided_slice %158 {offsets = [0, 0], sizes = [8, 64], strides = [1, 1]} : vector<8x256xf32> to vector<8x64xf32>
    %160 = vector.extract_strided_slice %158 {offsets = [0, 64], sizes = [8, 64], strides = [1, 1]} : vector<8x256xf32> to vector<8x64xf32>
    %161 = vector.extract_strided_slice %158 {offsets = [0, 128], sizes = [8, 64], strides = [1, 1]} : vector<8x256xf32> to vector<8x64xf32>
    %162 = vector.extract_strided_slice %158 {offsets = [0, 192], sizes = [8, 64], strides = [1, 1]} : vector<8x256xf32> to vector<8x64xf32>
    %163 = arith.mulf %160, %145 : vector<8x64xf32>
    %164 = arith.mulf %159, %162 : vector<8x64xf32>
    %165 = arith.addf %163, %164 : vector<8x64xf32>
    %166 = math.tanh %165 : vector<8x64xf32>
    %167 = arith.mulf %161, %166 : vector<8x64xf32>
    %c7_i32 = arith.constant 7 : i32
    %c8_i32_42 = arith.constant 8 : i32
    %168 = arith.muli %c7_i32, %c8_i32_42 : i32
    %169 = tpu.assume_multiple %168, 8 : i32
    %170 = arith.index_cast %169 : i32 to index
    %c0_43 = arith.constant 0 : index
    %171 = vector.load %arg10[%170, %c0_43] : memref<64x256xf32, #tpu.memory_space<vmem>>, vector<8x256xf32>
    %cst_44 = arith.constant dense<0.000000e+00> : vector<8x256xf32>
    %172 = tpu.matmul %167, %14, %cst_44 {dimension_numbers = #tpu.dot_dimension_numbers<[1], [0], [0], [1], [0, 0, 1, 1], [], []>} : vector<8x64xf32>, vector<64x256xf32>, vector<8x256xf32> -> vector<8x256xf32>
    %173 = arith.addf %171, %172 : vector<8x256xf32>
    %174 = math.tanh %173 : vector<8x256xf32>
    %175 = vector.broadcast %20 : vector<1x256xf32> to vector<8x256xf32>
    %176 = arith.mulf %175, %174 : vector<8x256xf32>
    %177 = vector.broadcast %25 : vector<1x256xf32> to vector<8x256xf32>
    %178 = arith.addf %176, %177 : vector<8x256xf32>
    %179 = vector.extract_strided_slice %178 {offsets = [0, 0], sizes = [8, 64], strides = [1, 1]} : vector<8x256xf32> to vector<8x64xf32>
    %180 = vector.extract_strided_slice %178 {offsets = [0, 64], sizes = [8, 64], strides = [1, 1]} : vector<8x256xf32> to vector<8x64xf32>
    %181 = vector.extract_strided_slice %178 {offsets = [0, 128], sizes = [8, 64], strides = [1, 1]} : vector<8x256xf32> to vector<8x64xf32>
    %182 = vector.extract_strided_slice %178 {offsets = [0, 192], sizes = [8, 64], strides = [1, 1]} : vector<8x256xf32> to vector<8x64xf32>
    %183 = arith.mulf %180, %165 : vector<8x64xf32>
    %184 = arith.mulf %179, %182 : vector<8x64xf32>
    %185 = arith.addf %183, %184 : vector<8x64xf32>
    %186 = math.tanh %185 : vector<8x64xf32>
    %187 = arith.mulf %181, %186 : vector<8x64xf32>
    %c8_i32_45 = arith.constant 8 : i32
    %c0_46 = arith.constant 0 : index
    %c0_47 = arith.constant 0 : index
    %188 = vector.load %arg7[%c0_46, %c0_47] : memref<64x128xf32, #tpu.memory_space<vmem>>, vector<64x128xf32>
    %cst_48 = arith.constant dense<0.000000e+00> : vector<8x128xf32>
    %189 = tpu.matmul %187, %188, %cst_48 {dimension_numbers = #tpu.dot_dimension_numbers<[1], [0], [0], [1], [0, 0, 1, 1], [], []>} : vector<8x64xf32>, vector<64x128xf32>, vector<8x128xf32> -> vector<8x128xf32>
    %c0_49 = arith.constant 0 : index
    %c0_50 = arith.constant 0 : index
    %190 = vector.load %arg8[%c0_49, %c0_50] : memref<1x128xf32, #tpu.memory_space<vmem>>, vector<1x128xf32>
    %191 = vector.broadcast %190 : vector<1x128xf32> to vector<8x128xf32>
    %192 = arith.addf %189, %191 : vector<8x128xf32>
    %c0_51 = arith.constant 0 : index
    %c0_52 = arith.constant 0 : index
    %193 = vector.load %arg9[%c0_51, %c0_52] : memref<8x128xf32, #tpu.memory_space<vmem>>, vector<8x128xf32>
    tpu.vector_store %arg9[%c0_51, %c0_52], %192 {strides = array<i32>} : memref<8x128xf32, #tpu.memory_space<vmem>>, vector<8x128xf32>,
    return
  }
  func.func @transform_0(%arg0: i32) -> (i32, i32) {
    %c0_i32 = arith.constant 0 : i32
    %c0_i32_0 = arith.constant 0 : i32
    %c0_i32_1 = arith.constant 0 : i32
    return %c0_i32, %c0_i32_0 : i32, i32
  }
  func.func @transform_1(%arg0: i32) -> (i32, i32) {
    %c0_i32 = arith.constant 0 : i32
    %c0_i32_0 = arith.constant 0 : i32
    %c0_i32_1 = arith.constant 0 : i32
    return %c0_i32, %c0_i32_0 : i32, i32
  }
  func.func @transform_2(%arg0: i32) -> (i32, i32) {
    %c0_i32 = arith.constant 0 : i32
    %c0_i32_0 = arith.constant 0 : i32
    %c0_i32_1 = arith.constant 0 : i32
    return %c0_i32, %c0_i32_0 : i32, i32
  }
  func.func @transform_3(%arg0: i32) -> (i32, i32) {
    %c0_i32 = arith.constant 0 : i32
    %c0_i32_0 = arith.constant 0 : i32
    %c0_i32_1 = arith.constant 0 : i32
    return %c0_i32, %c0_i32_0 : i32, i32
  }
  func.func @transform_4(%arg0: i32) -> (i32, i32) {
    %c0_i32 = arith.constant 0 : i32
    %c0_i32_0 = arith.constant 0 : i32
    %c0_i32_1 = arith.constant 0 : i32
    return %c0_i32, %c0_i32_0 : i32, i32
  }
  func.func @transform_5(%arg0: i32) -> (i32, i32) {
    %c0_i32 = arith.constant 0 : i32
    %c0_i32_0 = arith.constant 0 : i32
    %c0_i32_1 = arith.constant 0 : i32
    return %c0_i32, %c0_i32_0 : i32, i32
  }
  func.func @transform_6(%arg0: i32) -> (i32, i32) {
    %c0_i32 = arith.constant 0 : i32
    %c0_i32_0 = arith.constant 0 : i32
    %c0_i32_1 = arith.constant 0 : i32
    return %c0_i32, %c0_i32_0 : i32, i32
  }
  func.func @transform_7(%arg0: i32) -> (i32, i32) {
    %c0_i32 = arith.constant 0 : i32
    %c0_i32_0 = arith.constant 0 : i32
    %c0_i32_1 = arith.constant 0 : i32
    return %c0_i32, %c0_i32_0 : i32, i32
  }
  func.func @transform_8(%arg0: i32) -> (i32, i32) {
    %c0_i32 = arith.constant 0 : i32
    %c0_i32_0 = arith.constant 0 : i32
    %c0_i32_1 = arith.constant 0 : i32
    return %c0_i32, %c0_i32_0 : i32, i32
  }
}

</mosaic_0001>

<llo_original>
// kernel: discriminator_forward.1
$region0: #{discriminator_forward.1}
  #allocation0 [shape = 'u32[]', space=smem, size = 0x4, offset = 0x4, fixed_abs, tag = 'smem constant byte address 0x4 - core index']
  #allocation1 [shape = 'u32[144,128]{1,0:T(1,128)}', space=vmem, size = 0x12000, scoped, tag = 'internal scratch']
  #allocation2 [shape = 'f32[64,256]{1,0:T(8,128)}', space=vmem, size = 0x10000, scoped, tag = 'scratch operand']
  %s0 = inlined_call_operand.vmem [shape: f32[64,8], index: 0, kind: input, shape index: {}]
  %s1 = inlined_call_operand.vmem [shape: f32[8,16], index: 1, kind: input, shape index: {}]
  %s2 = inlined_call_operand.vmem [shape: f32[1,16], index: 2, kind: input, shape index: {}]
  %s3 = inlined_call_operand.vmem [shape: f32[16,256], index: 3, kind: input, shape index: {}]
  %s4 = inlined_call_operand.hbm [shape: f32[64,256], index: 4, kind: input, shape index: {}]
  %s5 = inlined_call_operand.vmem [shape: f32[1,256], index: 5, kind: input, shape index: {}]
  %s6 = inlined_call_operand.vmem [shape: f32[64,128], index: 6, kind: input, shape index: {}]
  %s7 = inlined_call_operand.vmem [shape: f32[1,128], index: 7, kind: input, shape index: {}]
  %s8 = inlined_call_operand.vmem [shape: f32[8,128], index: 8, kind: output, shape index: {}]
  %s9 = sld [smem:[#allocation0]]
  $region46: #{discriminator_forward.1} parent=0
    _
  %s11 = ssub.s32 1, %s9
  %s12 = scalar_select 0, %s11, %s9
  $region1: #{discriminator_forward.1} parent=0
    #allocation3 [shape = 'u8[65536]{0}', space=vmem, size = 0x10000, scoped, tag = 'input window, operand 4, single buffered']
    #allocation4 [shape = 's32[1]{0}', space=sflag, size = 0x4, scoped, tag = 'scoped memory for discriminator_forward.1']
    %13 = vsyncpa [#allocation4], 0
    // Predicated region
    $region2: #{discriminator_forward.1} parent=1 // pred_check
      _
    $region3: #{discriminator_forward.1} parent=1 // pred_check_branch
      %15 = sbr.rel (0) target = $region5
    $region4: #{discriminator_forward.1} parent=1 // pred_region
      _
    $region5: #{discriminator_forward.1} parent=1 // pred_fallthru
      _
    // Predicated region
    $region6: #{discriminator_forward.1} parent=1 // pred_check
      _
    $region7: #{discriminator_forward.1} parent=1 // pred_check_branch
      %17 = sbr.rel (0) target = $region9
    $region8: #{discriminator_forward.1} parent=1 // pred_region
      _
    $region9: #{discriminator_forward.1} parent=1 // pred_fallthru
      _
    // Predicated region
    $region10: #{discriminator_forward.1} parent=1 // pred_check
      _
    $region11: #{discriminator_forward.1} parent=1 // pred_check_branch
      %19 = sbr.rel (0) target = $region13
    $region12: #{discriminator_forward.1} parent=1 // pred_region
      _
    $region13: #{discriminator_forward.1} parent=1 // pred_fallthru
      _
    // Predicated region
    $region14: #{discriminator_forward.1} parent=1 // pred_check
      _
    $region15: #{discriminator_forward.1} parent=1 // pred_check_branch
      %21 = sbr.rel (0) target = $region17
    $region16: #{discriminator_forward.1} parent=1 // pred_region
      _
    $region17: #{discriminator_forward.1} parent=1 // pred_fallthru
      _
    // Predicated region
    $region18: #{discriminator_forward.1} parent=1 // pred_check
      _
    $region19: #{discriminator_forward.1} parent=1 // pred_check_branch
      %23 = sbr.rel (0) target = $region21
    $region20: #{discriminator_forward.1} parent=1 // pred_region
      %s25 = ssub.s32 2048, 2048
      %26 = vsyncadd [#allocation4], %s25
      %s27 = sshll.u32 [#allocation3], 4
      %s28 = int_to_ptr.vmem [resolvable:$true] %s27
      %33 = dma.hbm_to_vmem [thread:$0]  %s4, 2048, %s28, [#allocation4], 256, 256, 16
    $region21: #{discriminator_forward.1} parent=1 // pred_fallthru
      _
    // Predicated region
    $region22: #{discriminator_forward.1} parent=1 // pred_check
      _
    $region23: #{discriminator_forward.1} parent=1 // pred_check_branch
      %35 = sbr.rel (0) target = $region25
    $region24: #{discriminator_forward.1} parent=1 // pred_region
      _
    $region25: #{discriminator_forward.1} parent=1 // pred_fallthru
      _
    // Predicated region
    $region26: #{discriminator_forward.1} parent=1 // pred_check
      _
    $region27: #{discriminator_forward.1} parent=1 // pred_check_branch
      %37 = sbr.rel (0) target = $region29
    $region28: #{discriminator_forward.1} parent=1 // pred_region
      _
    $region29: #{discriminator_forward.1} parent=1 // pred_fallthru
      _
    // Predicated region
    $region30: #{discriminator_forward.1} parent=1 // pred_check
      _
    $region31: #{discriminator_forward.1} parent=1 // pred_check_branch
      %39 = sbr.rel (0) target = $region33
    $region32: #{discriminator_forward.1} parent=1 // pred_region
      _
    $region33: #{discriminator_forward.1} parent=1 // pred_fallthru
      _
    // Predicated region
    $region34: #{discriminator_forward.1} parent=1 // pred_check
      _
    $region35: #{discriminator_forward.1} parent=1 // pred_check_branch
      %41 = sbr.rel (0) target = $region37
    $region36: #{discriminator_forward.1} parent=1 // pred_region
      %42 = dma.done [#allocation4], 2048
    $region37: #{discriminator_forward.1} parent=1 // pred_fallthru
      _
    %v43 = vld [vmem:[%s0] sm:$0xff]
    %v44 = vld [vmem:[%s0 + $0x8] sm:$0xff]
    %v45 = vld [vmem:[%s0 + $0x10] sm:$0xff]
    %v46 = vld [vmem:[%s0 + $0x18] sm:$0xff]
    %v47 = vld [vmem:[%s0 + $0x20] sm:$0xff]
    %v48 = vld [vmem:[%s0 + $0x28] sm:$0xff]
    %v49 = vld [vmem:[%s0 + $0x30] sm:$0xff]
    %v50 = vld [vmem:[%s0 + $0x38] sm:$0xff]
    %v51 = vld [vmem:[%s1] sm:$0xff]
    %v52 = vld [vmem:[%s2] sm:$0x1]
    %v54 = vlaneseq
    %v55 = vshrl.u32 %v54, 7
    %v56 = vsub.s32 0, %v55
    %v57 = vrot.slane %v52, %v56
    %vm59 = vcmask 64512
    %v61 = vsel %vm59, %v43, 0
    %v64 = vsel %vm59, %v44, 0
    %v67 = vsel %vm59, %v45, 0
    %v70 = vsel %vm59, %v46, 0
    %v73 = vsel %vm59, %v47, 0
    %v76 = vsel %vm59, %v48, 0
    %v79 = vsel %vm59, %v49, 0
    %v82 = vsel %vm59, %v50, 0
    %84 = vmatprep.subr.mxu0 0.0
    %85 = vmatpush1.msra.mxu0 %v51
    %86 = vmatprep.subr.mxu0 0.0
    %87 = vmatpush1.msra.mxu0 0.0
    %88 = vmatprep.subr.mxu0 0.0
    %89 = vmatpush1.msra.mxu0 0.0
    %90 = vmatprep.subr.mxu0 0.0
    %91 = vmatpush1.msra.mxu0 0.0
    %92 = vmatprep.subr.mxu0 0.0
    %93 = vmatpush1.msra.mxu0 0.0
    %94 = vmatprep.subr.mxu0 0.0
    %95 = vmatpush1.msra.mxu0 0.0
    %96 = vmatprep.subr.mxu0 0.0
    %97 = vmatpush1.msra.mxu0 0.0
    %98 = vmatprep.subr.mxu0 0.0
    %99 = vmatpush1.msra.mxu0 0.0
    %100 = vmatprep.subr.mxu0 0.0
    %101 = vmatpush1.msra.mxu0 0.0
    %102 = vmatprep.subr.mxu0 0.0
    %103 = vmatpush1.msra.mxu0 0.0
    %104 = vmatprep.subr.mxu0 0.0
    %105 = vmatpush1.msra.mxu0 0.0
    %106 = vmatprep.subr.mxu0 0.0
    %107 = vmatpush1.msra.mxu0 0.0
    %108 = vmatprep.subr.mxu0 0.0
    %109 = vmatpush1.msra.mxu0 0.0
    %110 = vmatprep.subr.mxu0 0.0
    %111 = vmatpush1.msra.mxu0 0.0
    %112 = vmatprep.subr.mxu0 0.0
    %113 = vmatpush1.msra.mxu0 0.0
    %114 = vmatprep.subr.mxu0 0.0
    %115 = vmatpush1.msra.mxu0 0.0
    %116 = vmatprep.subr.mxu0 0.0
    %117 = vmatpush1.msra.mxu0 0.0
    %118 = vmatprep.subr.mxu0 0.0
    %119 = vmatpush1.msra.mxu0 0.0
    %120 = vmatprep.subr.mxu0 0.0
    %121 = vmatpush1.msra.mxu0 0.0
    %122 = vmatprep.subr.mxu0 0.0
    %123 = vmatpush1.msra.mxu0 0.0
    %124 = vmatprep.subr.mxu0 0.0
    %125 = vmatpush1.msra.mxu0 0.0
    %126 = vmatprep.subr.mxu0 0.0
    %127 = vmatpush1.msra.mxu0 0.0
    %128 = vmatprep.subr.mxu0 0.0
    %129 = vmatpush1.msra.mxu0 0.0
    %130 = vmatprep.subr.mxu0 0.0
    %131 = vmatpush1.msra.mxu0 0.0
    %132 = vmatprep.subr.mxu0 0.0
    %133 = vmatpush1.msra.mxu0 0.0
    %134 = vmatprep.subr.mxu0 0.0
    %135 = vmatpush1.msra.mxu0 0.0
    %136 = vmatprep.subr.mxu0 0.0
    %137 = vmatpush1.msra.mxu0 0.0
    %138 = vmatprep.subr.mxu0 0.0
    %139 = vmatpush1.msra.mxu0 0.0
    %140 = vmatprep.subr.mxu0 0.0
    %141 = vmatpush1.msra.mxu0 0.0
    %142 = vmatprep.subr.mxu0 0.0
    %143 = vmatpush1.msra.mxu0 0.0
    %144 = vmatprep.subr.mxu0 0.0
    %145 = vmatpush1.msra.mxu0 0.0
    %146 = vmatprep.subr.mxu0 0.0
    %147 = vmatpush1.msra.mxu0 0.0
    %148 = vmatprep.mubr.f32.mxu0 0.0
    %149 = vmatmul.mubr.f32.gmra.mrb[0].mxu0 %v61
    %v150 = vpop.f32.mrb[0].mxu0
    %v151 = vadd.f32 %v57, %v150
    %v152 = vpop.f32.mrb[0].mxu0
    %153 = vmatprep.mubr.f32.mxu0 0.0
    %154 = vmatmul.mubr.f32.gmra.mrb[0].mxu0 %v64
    %v155 = vpop.f32.mrb[0].mxu0
    %v156 = vadd.f32 %v57, %v155
    %v157 = vpop.f32.mrb[0].mxu0
    %158 = vmatprep.mubr.f32.mxu0 0.0
    %159 = vmatmul.mubr.f32.gmra.mrb[0].mxu0 %v67
    %v160 = vpop.f32.mrb[0].mxu0
    %v161 = vadd.f32 %v57, %v160
    %v162 = vpop.f32.mrb[0].mxu0
    %163 = vmatprep.mubr.f32.mxu0 0.0
    %164 = vmatmul.mubr.f32.gmra.mrb[0].mxu0 %v70
    %v165 = vpop.f32.mrb[0].mxu0
    %v166 = vadd.f32 %v57, %v165
    %v167 = vpop.f32.mrb[0].mxu0
    %168 = vmatprep.mubr.f32.mxu0 0.0
    %169 = vmatmul.mubr.f32.gmra.mrb[0].mxu0 %v73
    %v170 = vpop.f32.mrb[0].mxu0
    %v171 = vadd.f32 %v57, %v170
    %v172 = vpop.f32.mrb[0].mxu0
    %173 = vmatprep.mubr.f32.mxu0 0.0
    %174 = vmatmul.mubr.f32.gmra.mrb[0].mxu0 %v76
    %v175 = vpop.f32.mrb[0].mxu0
    %v176 = vadd.f32 %v57, %v175
    %v177 = vpop.f32.mrb[0].mxu0
    %178 = vmatprep.mubr.f32.mxu0 0.0
    %179 = vmatmul.mubr.f32.gmra.mrb[0].mxu0 %v79
    %v180 = vpop.f32.mrb[0].mxu0
    %v181 = vadd.f32 %v57, %v180
    %v182 = vpop.f32.mrb[0].mxu0
    %183 = vmatprep.mubr.f32.mxu0 0.0
    %184 = vmatmul.mubr.f32.gmra.mrb[0].mxu0 %v82
    %v185 = vpop.f32.mrb[0].mxu0
    %v186 = vadd.f32 %v57, %v185
    %v187 = vpop.f32.mrb[0].mxu0
    %188 = vdwg.mxu0
    %v189 = vmax.f32 %v151, 0.0
    %v190 = vmax.f32 %v156, 0.0
    %v191 = vmax.f32 %v161, 0.0
    %v192 = vmax.f32 %v166, 0.0
    %v193 = vmax.f32 %v171, 0.0
    %v194 = vmax.f32 %v176, 0.0
    %v195 = vmax.f32 %v181, 0.0
    %v196 = vmax.f32 %v186, 0.0
    %v197 = vld [vmem:[%s3] sm:$0xff]
    %v198 = vld [vmem:[%s3 + $0x8] sm:$0xff]
    %v199 = vld [vmem:[%s3 + $0x10] sm:$0xff]
    %v200 = vld [vmem:[%s3 + $0x18] sm:$0xff]
    %v201 = vld [vmem:[%s5] sm:$0x3]
    %v203 = vlaneseq
    %v204 = vshrl.u32 %v203, 7
    %v205 = vsub.s32 0, %v204
    %v206 = vrot.slane %v201, %v205
    %v207 = vlaneseq
    %v208 = vshrl.u32 %v207, 7
    %v209 = vsub.s32 1, %v208
    %v210 = vrot.slane %v201, %v209
    %vm213 = vcmask 130048
    %v215 = vsel %vm213, %v189, 0
    %v218 = vsel %vm213, %v190, 0
    %v221 = vsel %vm213, %v191, 0
    %v224 = vsel %vm213, %v192, 0
    %v227 = vsel %vm213, %v193, 0
    %v230 = vsel %vm213, %v194, 0
    %v233 = vsel %vm213, %v195, 0
    %v236 = vsel %vm213, %v196, 0
    %238 = vmatprep.subr.mxu0 %v198
    %239 = vmatpush1.msra.mxu0 %v197
    %240 = vmatprep.subr.mxu0 %v200
    %241 = vmatpush1.msra.mxu0 %v199
    %242 = vmatprep.subr.mxu0 0.0
    %243 = vmatpush1.msra.mxu0 0.0
    %244 = vmatprep.subr.mxu0 0.0
    %245 = vmatpush1.msra.mxu0 0.0
    %246 = vmatprep.subr.mxu0 0.0
    %247 = vmatpush1.msra.mxu0 0.0
    %248 = vmatprep.subr.mxu0 0.0
    %249 = vmatpush1.msra.mxu0 0.0
    %250 = vmatprep.subr.mxu0 0.0
    %251 = vmatpush1.msra.mxu0 0.0
    %252 = vmatprep.subr.mxu0 0.0
    %253 = vmatpush1.msra.mxu0 0.0
    %254 = vmatprep.subr.mxu0 0.0
    %255 = vmatpush1.msra.mxu0 0.0
    %256 = vmatprep.subr.mxu0 0.0
    %257 = vmatpush1.msra.mxu0 0.0
    %258 = vmatprep.subr.mxu0 0.0
    %259 = vmatpush1.msra.mxu0 0.0
    %260 = vmatprep.subr.mxu0 0.0
    %261 = vmatpush1.msra.mxu0 0.0
    %262 = vmatprep.subr.mxu0 0.0
    %263 = vmatpush1.msra.mxu0 0.0
    %264 = vmatprep.subr.mxu0 0.0
    %265 = vmatpush1.msra.mxu0 0.0
    %266 = vmatprep.subr.mxu0 0.0
    %267 = vmatpush1.msra.mxu0 0.0
    %268 = vmatprep.subr.mxu0 0.0
    %269 = vmatpush1.msra.mxu0 0.0
    %270 = vmatprep.subr.mxu0 0.0
    %271 = vmatpush1.msra.mxu0 0.0
    %272 = vmatprep.subr.mxu0 0.0
    %273 = vmatpush1.msra.mxu0 0.0
    %274 = vmatprep.subr.mxu0 0.0
    %275 = vmatpush1.msra.mxu0 0.0
    %276 = vmatprep.subr.mxu0 0.0
    %277 = vmatpush1.msra.mxu0 0.0
    %278 = vmatprep.subr.mxu0 0.0
    %279 = vmatpush1.msra.mxu0 0.0
    %280 = vmatprep.subr.mxu0 0.0
    %281 = vmatpush1.msra.mxu0 0.0
    %282 = vmatprep.subr.mxu0 0.0
    %283 = vmatpush1.msra.mxu0 0.0
    %284 = vmatprep.subr.mxu0 0.0
    %285 = vmatpush1.msra.mxu0 0.0
    %286 = vmatprep.subr.mxu0 0.0
    %287 = vmatpush1.msra.mxu0 0.0
    %288 = vmatprep.subr.mxu0 0.0
    %289 = vmatpush1.msra.mxu0 0.0
    %290 = vmatprep.subr.mxu0 0.0
    %291 = vmatpush1.msra.mxu0 0.0
    %292 = vmatprep.subr.mxu0 0.0
    %293 = vmatpush1.msra.mxu0 0.0
    %294 = vmatprep.subr.mxu0 0.0
    %295 = vmatpush1.msra.mxu0 0.0
    %296 = vmatprep.subr.mxu0 0.0
    %297 = vmatpush1.msra.mxu0 0.0
    %298 = vmatprep.subr.mxu0 0.0
    %299 = vmatpush1.msra.mxu0 0.0
    %300 = vmatprep.subr.mxu0 0.0
    %301 = vmatpush1.msra.mxu0 0.0
    %302 = vmatprep.mubr.f32.mxu0 0.0
    %303 = vmatmul.mubr.f32.gmra.mrb[0].mxu0 %v215
    %v304 = vpop.f32.mrb[0].mxu0
    %v305 = vadd.f32 %v206, %v304
    %v306 = vpop.f32.mrb[0].mxu0
    %v307 = vadd.f32 %v210, %v306
    %308 = vmatprep.mubr.f32.mxu0 0.0
    %309 = vmatmul.mubr.f32.gmra.mrb[0].mxu0 %v218
    %v310 = vpop.f32.mrb[0].mxu0
    %v311 = vadd.f32 %v206, %v310
    %v312 = vpop.f32.mrb[0].mxu0
    %v313 = vadd.f32 %v210, %v312
    %314 = vmatprep.mubr.f32.mxu0 0.0
    %315 = vmatmul.mubr.f32.gmra.mrb[0].mxu0 %v221
    %v316 = vpop.f32.mrb[0].mxu0
    %v317 = vadd.f32 %v206, %v316
    %v318 = vpop.f32.mrb[0].mxu0
    %v319 = vadd.f32 %v210, %v318
    %320 = vmatprep.mubr.f32.mxu0 0.0
    %321 = vmatmul.mubr.f32.gmra.mrb[0].mxu0 %v224
    %v322 = vpop.f32.mrb[0].mxu0
    %v323 = vadd.f32 %v206, %v322
    %v324 = vpop.f32.mrb[0].mxu0
    %v325 = vadd.f32 %v210, %v324
    %326 = vmatprep.mubr.f32.mxu0 0.0
    %327 = vmatmul.mubr.f32.gmra.mrb[0].mxu0 %v227
    %v328 = vpop.f32.mrb[0].mxu0
    %v329 = vadd.f32 %v206, %v328
    %v330 = vpop.f32.mrb[0].mxu0
    %v331 = vadd.f32 %v210, %v330
    %332 = vmatprep.mubr.f32.mxu0 0.0
    %333 = vmatmul.mubr.f32.gmra.mrb[0].mxu0 %v230
    %v334 = vpop.f32.mrb[0].mxu0
    %v335 = vadd.f32 %v206, %v334
    %v336 = vpop.f32.mrb[0].mxu0
    %v337 = vadd.f32 %v210, %v336
    %338 = vmatprep.mubr.f32.mxu0 0.0
    %339 = vmatmul.mubr.f32.gmra.mrb[0].mxu0 %v233
    %v340 = vpop.f32.mrb[0].mxu0
    %v341 = vadd.f32 %v206, %v340
    %v342 = vpop.f32.mrb[0].mxu0
    %v343 = vadd.f32 %v210, %v342
    %344 = vmatprep.mubr.f32.mxu0 0.0
    %345 = vmatmul.mubr.f32.gmra.mrb[0].mxu0 %v236
    %v346 = vpop.f32.mrb[0].mxu0
    %v347 = vadd.f32 %v206, %v346
    %v348 = vpop.f32.mrb[0].mxu0
    %v349 = vadd.f32 %v210, %v348
    %350 = vdwg.mxu0
    %351 = vst [vmem:[#allocation2] sm:$0xff] %v305
    %352 = vst [vmem:[#allocation2 + $0x8] sm:$0xff] %v307
    %353 = vst [vmem:[#allocation2 + $0x10] sm:$0xff] %v311
    %354 = vst [vmem:[#allocation2 + $0x18] sm:$0xff] %v313
    %355 = vst [vmem:[#allocation2 + $0x20] sm:$0xff] %v317
    %356 = vst [vmem:[#allocation2 + $0x28] sm:$0xff] %v319
    %357 = vst [vmem:[#allocation2 + $0x30] sm:$0xff] %v323
    %358 = vst [vmem:[#allocation2 + $0x38] sm:$0xff] %v325
    %359 = vst [vmem:[#allocation2 + $0x40] sm:$0xff] %v329
    %360 = vst [vmem:[#allocation2 + $0x48] sm:$0xff] %v331
    %361 = vst [vmem:[#allocation2 + $0x50] sm:$0xff] %v335
    %362 = vst [vmem:[#allocation2 + $0x58] sm:$0xff] %v337
    %363 = vst [vmem:[#allocation2 + $0x60] sm:$0xff] %v341
    %364 = vst [vmem:[#allocation2 + $0x68] sm:$0xff] %v343
    %365 = vst [vmem:[#allocation2 + $0x70] sm:$0xff] %v347
    %366 = vst [vmem:[#allocation2 + $0x78] sm:$0xff] %v349
    %v367 = vld [vmem:[#allocation3] sm:$0xff]
    %v368 = vld [vmem:[#allocation3 + $0x8] sm:$0xff]
    %v369 = vld [vmem:[#allocation3 + $0x10] sm:$0xff]
    %v370 = vld [vmem:[#allocation3 + $0x18] sm:$0xff]
    %v371 = vld [vmem:[#allocation3 + $0x20] sm:$0xff]
    %v372 = vld [vmem:[#allocation3 + $0x28] sm:$0xff]
    %v373 = vld [vmem:[#allocation3 + $0x30] sm:$0xff]
    %v374 = vld [vmem:[#allocation3 + $0x38] sm:$0xff]
    %v375 = vld [vmem:[#allocation3 + $0x40] sm:$0xff]
    %v376 = vld [vmem:[#allocation3 + $0x48] sm:$0xff]
    %v377 = vld [vmem:[#allocation3 + $0x50] sm:$0xff]
    %v378 = vld [vmem:[#allocation3 + $0x58] sm:$0xff]
    %v379 = vld [vmem:[#allocation3 + $0x60] sm:$0xff]
    %v380 = vld [vmem:[#allocation3 + $0x68] sm:$0xff]
    %v381 = vld [vmem:[#allocation3 + $0x70] sm:$0xff]
    %v382 = vld [vmem:[#allocation3 + $0x78] sm:$0xff]
    %v383 = vlaneseq
    %v384 = vand.u32 %v383, 127
    %v385 = vadd.s32 %v384, 128
    %vm386 = vcmp.lt.s32.totalorder %v384, 192
    %vm387 = vcmp.lt.s32.totalorder %v385, 192
    %v388 = vsel %vm386, 0.5, 1.0
    %v389 = vsel %vm387, 0.5, 1.0
    %v390 = vsel %vm386, 0.5, 0.0
    %v391 = vsel %vm387, 0.5, 0.0
    %s392 = smul.u32 0, 2
    %s393 = smul.addr %s392, 8
    %s394 = scalar_lea.vmem [#allocation2], %s393
    %v395 = vld [vmem:[%s394] sm:$0xff]
    %v396 = vld [vmem:[%s394 + $0x8] sm:$0xff]
    %vm397 = vcmask 523264
    %v399 = vsel %vm397, 0.0, 0
    %401 = vmatprep.subr.mxu0 %v368
    %402 = vmatpush1.msra.mxu0 %v367
    %403 = vmatprep.subr.mxu0 %v370
    %404 = vmatpush1.msra.mxu0 %v369
    %405 = vmatprep.subr.mxu0 %v372
    %406 = vmatpush1.msra.mxu0 %v371
    %407 = vmatprep.subr.mxu0 %v374
    %408 = vmatpush1.msra.mxu0 %v373
    %409 = vmatprep.subr.mxu0 %v376
    %410 = vmatpush1.msra.mxu0 %v375
    %411 = vmatprep.subr.mxu0 %v378
    %412 = vmatpush1.msra.mxu0 %v377
    %413 = vmatprep.subr.mxu0 %v380
    %414 = vmatpush1.msra.mxu0 %v379
    %415 = vmatprep.subr.mxu0 %v382
    %416 = vmatpush1.msra.mxu0 %v381
    %417 = vmatprep.subr.mxu0 0.0
    %418 = vmatpush1.msra.mxu0 0.0
    %419 = vmatprep.subr.mxu0 0.0
    %420 = vmatpush1.msra.mxu0 0.0
    %421 = vmatprep.subr.mxu0 0.0
    %422 = vmatpush1.msra.mxu0 0.0
    %423 = vmatprep.subr.mxu0 0.0
    %424 = vmatpush1.msra.mxu0 0.0
    %425 = vmatprep.subr.mxu0 0.0
    %426 = vmatpush1.msra.mxu0 0.0
    %427 = vmatprep.subr.mxu0 0.0
    %428 = vmatpush1.msra.mxu0 0.0
    %429 = vmatprep.subr.mxu0 0.0
    %430 = vmatpush1.msra.mxu0 0.0
    %431 = vmatprep.subr.mxu0 0.0
    %432 = vmatpush1.msra.mxu0 0.0
    %433 = vmatprep.subr.mxu0 0.0
    %434 = vmatpush1.msra.mxu0 0.0
    %435 = vmatprep.subr.mxu0 0.0
    %436 = vmatpush1.msra.mxu0 0.0
    %437 = vmatprep.subr.mxu0 0.0
    %438 = vmatpush1.msra.mxu0 0.0
    %439 = vmatprep.subr.mxu0 0.0
    %440 = vmatpush1.msra.mxu0 0.0
    %441 = vmatprep.subr.mxu0 0.0
    %442 = vmatpush1.msra.mxu0 0.0
    %443 = vmatprep.subr.mxu0 0.0
    %444 = vmatpush1.msra.mxu0 0.0
    %445 = vmatprep.subr.mxu0 0.0
    %446 = vmatpush1.msra.mxu0 0.0
    %447 = vmatprep.subr.mxu0 0.0
    %448 = vmatpush1.msra.mxu0 0.0
    %449 = vmatprep.subr.mxu0 0.0
    %450 = vmatpush1.msra.mxu0 0.0
    %451 = vmatprep.subr.mxu0 0.0
    %452 = vmatpush1.msra.mxu0 0.0
    %453 = vmatprep.subr.mxu0 0.0
    %454 = vmatpush1.msra.mxu0 0.0
    %455 = vmatprep.subr.mxu0 0.0
    %456 = vmatpush1.msra.mxu0 0.0
    %457 = vmatprep.subr.mxu0 0.0
    %458 = vmatpush1.msra.mxu0 0.0
    %459 = vmatprep.subr.mxu0 0.0
    %460 = vmatpush1.msra.mxu0 0.0
    %461 = vmatprep.subr.mxu0 0.0
    %462 = vmatpush1.msra.mxu0 0.0
    %463 = vmatprep.subr.mxu0 0.0
    %464 = vmatpush1.msra.mxu0 0.0
    %465 = vmatprep.mubr.f32.mxu0 0.0
    %466 = vmatmul.mubr.f32.gmra.mrb[0].mxu0 %v399
    %v467 = vpop.f32.mrb[0].mxu0
    %v468 = vadd.f32 0.0, %v467
    %v469 = vpop.f32.mrb[0].mxu0
    %v470 = vadd.f32 0.0, %v469
    %471 = vdwg.mxu0
    %v472 = vadd.f32 %v395, %v468
    %v473 = vadd.f32 %v396, %v470
    %v474 = vtanh.pop %v472
    %v475 = vtanh.pop %v473
    %v476 = vmul.f32 %v388, %v474
    %v477 = vmul.f32 %v389, %v475
    %v478 = vadd.f32 %v476, %v390
    %v479 = vadd.f32 %v477, %v391
    %v480 = vmul.f32 %v478, 0.0
    %482 = vrot.lane.b32.xlu0 %v479, 64
    %v483 = vpop.permute.xlu0 %482
    %v485 = vmul.f32 %v478, %v483
    %487 = vrot.lane.b32.xlu0 %v485, 64
    %v488 = vpop.permute.xlu0 %487
    %v490 = vadd.f32 %v480, %v488
    %v491 = vtanh.pop %v490
    %493 = vrot.lane.b32.xlu0 %v491, 64
    %v494 = vpop.permute.xlu0 %493
    %v496 = vmul.f32 %v479, %v494
    %s497 = smul.u32 1, 2
    %s498 = smul.addr %s497, 8
    %s499 = scalar_lea.vmem [#allocation2], %s498
    %v500 = vld [vmem:[%s499] sm:$0xff]
    %v501 = vld [vmem:[%s499 + $0x8] sm:$0xff]
    %v503 = vsel %vm397, %v496, 0
    %505 = vmatprep.subr.mxu0 %v368
    %506 = vmatpush1.msra.mxu0 %v367
    %507 = vmatprep.subr.mxu0 %v370
    %508 = vmatpush1.msra.mxu0 %v369
    %509 = vmatprep.subr.mxu0 %v372
    %510 = vmatpush1.msra.mxu0 %v371
    %511 = vmatprep.subr.mxu0 %v374
    %512 = vmatpush1.msra.mxu0 %v373
    %513 = vmatprep.subr.mxu0 %v376
    %514 = vmatpush1.msra.mxu0 %v375
    %515 = vmatprep.subr.mxu0 %v378
    %516 = vmatpush1.msra.mxu0 %v377
    %517 = vmatprep.subr.mxu0 %v380
    %518 = vmatpush1.msra.mxu0 %v379
    %519 = vmatprep.subr.mxu0 %v382
    %520 = vmatpush1.msra.mxu0 %v381
    %521 = vmatprep.subr.mxu0 0.0
    %522 = vmatpush1.msra.mxu0 0.0
    %523 = vmatprep.subr.mxu0 0.0
    %524 = vmatpush1.msra.mxu0 0.0
    %525 = vmatprep.subr.mxu0 0.0
    %526 = vmatpush1.msra.mxu0 0.0
    %527 = vmatprep.subr.mxu0 0.0
    %528 = vmatpush1.msra.mxu0 0.0
    %529 = vmatprep.subr.mxu0 0.0
    %530 = vmatpush1.msra.mxu0 0.0
    %531 = vmatprep.subr.mxu0 0.0
    %532 = vmatpush1.msra.mxu0 0.0
    %533 = vmatprep.subr.mxu0 0.0
    %534 = vmatpush1.msra.mxu0 0.0
    %535 = vmatprep.subr.mxu0 0.0
    %536 = vmatpush1.msra.mxu0 0.0
    %537 = vmatprep.subr.mxu0 0.0
    %538 = vmatpush1.msra.mxu0 0.0
    %539 = vmatprep.subr.mxu0 0.0
    %540 = vmatpush1.msra.mxu0 0.0
    %541 = vmatprep.subr.mxu0 0.0
    %542 = vmatpush1.msra.mxu0 0.0
    %543 = vmatprep.subr.mxu0 0.0
    %544 = vmatpush1.msra.mxu0 0.0
    %545 = vmatprep.subr.mxu0 0.0
    %546 = vmatpush1.msra.mxu0 0.0
    %547 = vmatprep.subr.mxu0 0.0
    %548 = vmatpush1.msra.mxu0 0.0
    %549 = vmatprep.subr.mxu0 0.0
    %550 = vmatpush1.msra.mxu0 0.0
    %551 = vmatprep.subr.mxu0 0.0
    %552 = vmatpush1.msra.mxu0 0.0
    %553 = vmatprep.subr.mxu0 0.0
    %554 = vmatpush1.msra.mxu0 0.0
    %555 = vmatprep.subr.mxu0 0.0
    %556 = vmatpush1.msra.mxu0 0.0
    %557 = vmatprep.subr.mxu0 0.0
    %558 = vmatpush1.msra.mxu0 0.0
    %559 = vmatprep.subr.mxu0 0.0
    %560 = vmatpush1.msra.mxu0 0.0
    %561 = vmatprep.subr.mxu0 0.0
    %562 = vmatpush1.msra.mxu0 0.0
    %563 = vmatprep.subr.mxu0 0.0
    %564 = vmatpush1.msra.mxu0 0.0
    %565 = vmatprep.subr.mxu0 0.0
    %566 = vmatpush1.msra.mxu0 0.0
    %567 = vmatprep.subr.mxu0 0.0
    %568 = vmatpush1.msra.mxu0 0.0
    %569 = vmatprep.mubr.f32.mxu0 0.0
    %570 = vmatmul.mubr.f32.gmra.mrb[0].mxu0 %v503
    %v571 = vpop.f32.mrb[0].mxu0
    %v572 = vadd.f32 0.0, %v571
    %v573 = vpop.f32.mrb[0].mxu0
    %v574 = vadd.f32 0.0, %v573
    %575 = vdwg.mxu0
    %v576 = vadd.f32 %v500, %v572
    %v577 = vadd.f32 %v501, %v574
    %v578 = vtanh.pop %v576
    %v579 = vtanh.pop %v577
    %v580 = vmul.f32 %v388, %v578
    %v581 = vmul.f32 %v389, %v579
    %v582 = vadd.f32 %v580, %v390
    %v583 = vadd.f32 %v581, %v391
    %v584 = vmul.f32 %v582, %v490
    %586 = vrot.lane.b32.xlu0 %v583, 64
    %v587 = vpop.permute.xlu0 %586
    %v589 = vmul.f32 %v582, %v587
    %591 = vrot.lane.b32.xlu0 %v589, 64
    %v592 = vpop.permute.xlu0 %591
    %v594 = vadd.f32 %v584, %v592
    %v595 = vtanh.pop %v594
    %597 = vrot.lane.b32.xlu0 %v595, 64
    %v598 = vpop.permute.xlu0 %597
    %v600 = vmul.f32 %v583, %v598
    %s601 = smul.u32 2, 2
    %s602 = smul.addr %s601, 8
    %s603 = scalar_lea.vmem [#allocation2], %s602
    %v604 = vld [vmem:[%s603] sm:$0xff]
    %v605 = vld [vmem:[%s603 + $0x8] sm:$0xff]
    %v607 = vsel %vm397, %v600, 0
    %609 = vmatprep.subr.mxu0 %v368
    %610 = vmatpush1.msra.mxu0 %v367
    %611 = vmatprep.subr.mxu0 %v370
    %612 = vmatpush1.msra.mxu0 %v369
    %613 = vmatprep.subr.mxu0 %v372
    %614 = vmatpush1.msra.mxu0 %v371
    %615 = vmatprep.subr.mxu0 %v374
    %616 = vmatpush1.msra.mxu0 %v373
    %617 = vmatprep.subr.mxu0 %v376
    %618 = vmatpush1.msra.mxu0 %v375
    %619 = vmatprep.subr.mxu0 %v378
    %620 = vmatpush1.msra.mxu0 %v377
    %621 = vmatprep.subr.mxu0 %v380
    %622 = vmatpush1.msra.mxu0 %v379
    %623 = vmatprep.subr.mxu0 %v382
    %624 = vmatpush1.msra.mxu0 %v381
    %625 = vmatprep.subr.mxu0 0.0
    %626 = vmatpush1.msra.mxu0 0.0
    %627 = vmatprep.subr.mxu0 0.0
    %628 = vmatpush1.msra.mxu0 0.0
    %629 = vmatprep.subr.mxu0 0.0
    %630 = vmatpush1.msra.mxu0 0.0
    %631 = vmatprep.subr.mxu0 0.0
    %632 = vmatpush1.msra.mxu0 0.0
    %633 = vmatprep.subr.mxu0 0.0
    %634 = vmatpush1.msra.mxu0 0.0
    %635 = vmatprep.subr.mxu0 0.0
    %636 = vmatpush1.msra.mxu0 0.0
    %637 = vmatprep.subr.mxu0 0.0
    %638 = vmatpush1.msra.mxu0 0.0
    %639 = vmatprep.subr.mxu0 0.0
    %640 = vmatpush1.msra.mxu0 0.0
    %641 = vmatprep.subr.mxu0 0.0
    %642 = vmatpush1.msra.mxu0 0.0
    %643 = vmatprep.subr.mxu0 0.0
    %644 = vmatpush1.msra.mxu0 0.0
    %645 = vmatprep.subr.mxu0 0.0
    %646 = vmatpush1.msra.mxu0 0.0
    %647 = vmatprep.subr.mxu0 0.0
    %648 = vmatpush1.msra.mxu0 0.0
    %649 = vmatprep.subr.mxu0 0.0
    %650 = vmatpush1.msra.mxu0 0.0
    %651 = vmatprep.subr.mxu0 0.0
    %652 = vmatpush1.msra.mxu0 0.0
    %653 = vmatprep.subr.mxu0 0.0
    %654 = vmatpush1.msra.mxu0 0.0
    %655 = vmatprep.subr.mxu0 0.0
    %656 = vmatpush1.msra.mxu0 0.0
    %657 = vmatprep.subr.mxu0 0.0
    %658 = vmatpush1.msra.mxu0 0.0
    %659 = vmatprep.subr.mxu0 0.0
    %660 = vmatpush1.msra.mxu0 0.0
    %661 = vmatprep.subr.mxu0 0.0
    %662 = vmatpush1.msra.mxu0 0.0
    %663 = vmatprep.subr.mxu0 0.0
    %664 = vmatpush1.msra.mxu0 0.0
    %665 = vmatprep.subr.mxu0 0.0
    %666 = vmatpush1.msra.mxu0 0.0
    %667 = vmatprep.subr.mxu0 0.0
    %668 = vmatpush1.msra.mxu0 0.0
    %669 = vmatprep.subr.mxu0 0.0
    %670 = vmatpush1.msra.mxu0 0.0
    %671 = vmatprep.subr.mxu0 0.0
    %672 = vmatpush1.msra.mxu0 0.0
    %673 = vmatprep.mubr.f32.mxu0 0.0
    %674 = vmatmul.mubr.f32.gmra.mrb[0].mxu0 %v607
    %v675 = vpop.f32.mrb[0].mxu0
    %v676 = vadd.f32 0.0, %v675
    %v677 = vpop.f32.mrb[0].mxu0
    %v678 = vadd.f32 0.0, %v677
    %679 = vdwg.mxu0
    %v680 = vadd.f32 %v604, %v676
    %v681 = vadd.f32 %v605, %v678
    %v682 = vtanh.pop %v680
    %v683 = vtanh.pop %v681
    %v684 = vmul.f32 %v388, %v682
    %v685 = vmul.f32 %v389, %v683
    %v686 = vadd.f32 %v684, %v390
    %v687 = vadd.f32 %v685, %v391
    %v688 = vmul.f32 %v686, %v594
    %690 = vrot.lane.b32.xlu0 %v687, 64
    %v691 = vpop.permute.xlu0 %690
    %v693 = vmul.f32 %v686, %v691
    %695 = vrot.lane.b32.xlu0 %v693, 64
    %v696 = vpop.permute.xlu0 %695
    %v698 = vadd.f32 %v688, %v696
    %v699 = vtanh.pop %v698
    %701 = vrot.lane.b32.xlu0 %v699, 64
    %v702 = vpop.permute.xlu0 %701
    %v704 = vmul.f32 %v687, %v702
    %s705 = smul.u32 3, 2
    %s706 = smul.addr %s705, 8
    %s707 = scalar_lea.vmem [#allocation2], %s706
    %v708 = vld [vmem:[%s707] sm:$0xff]
    %v709 = vld [vmem:[%s707 + $0x8] sm:$0xff]
    %v711 = vsel %vm397, %v704, 0
    %713 = vmatprep.subr.mxu0 %v368
    %714 = vmatpush1.msra.mxu0 %v367
    %715 = vmatprep.subr.mxu0 %v370
    %716 = vmatpush1.msra.mxu0 %v369
    %717 = vmatprep.subr.mxu0 %v372
    %718 = vmatpush1.msra.mxu0 %v371
    %719 = vmatprep.subr.mxu0 %v374
    %720 = vmatpush1.msra.mxu0 %v373
    %721 = vmatprep.subr.mxu0 %v376
    %722 = vmatpush1.msra.mxu0 %v375
    %723 = vmatprep.subr.mxu0 %v378
    %724 = vmatpush1.msra.mxu0 %v377
    %725 = vmatprep.subr.mxu0 %v380
    %726 = vmatpush1.msra.mxu0 %v379
    %727 = vmatprep.subr.mxu0 %v382
    %728 = vmatpush1.msra.mxu0 %v381
    %729 = vmatprep.subr.mxu0 0.0
    %730 = vmatpush1.msra.mxu0 0.0
    %731 = vmatprep.subr.mxu0 0.0
    %732 = vmatpush1.msra.mxu0 0.0
    %733 = vmatprep.subr.mxu0 0.0
    %734 = vmatpush1.msra.mxu0 0.0
    %735 = vmatprep.subr.mxu0 0.0
    %736 = vmatpush1.msra.mxu0 0.0
    %737 = vmatprep.subr.mxu0 0.0
    %738 = vmatpush1.msra.mxu0 0.0
    %739 = vmatprep.subr.mxu0 0.0
    %740 = vmatpush1.msra.mxu0 0.0
    %741 = vmatprep.subr.mxu0 0.0
    %742 = vmatpush1.msra.mxu0 0.0
    %743 = vmatprep.subr.mxu0 0.0
    %744 = vmatpush1.msra.mxu0 0.0
    %745 = vmatprep.subr.mxu0 0.0
    %746 = vmatpush1.msra.mxu0 0.0
    %747 = vmatprep.subr.mxu0 0.0
    %748 = vmatpush1.msra.mxu0 0.0
    %749 = vmatprep.subr.mxu0 0.0
    %750 = vmatpush1.msra.mxu0 0.0
    %751 = vmatprep.subr.mxu0 0.0
    %752 = vmatpush1.msra.mxu0 0.0
    %753 = vmatprep.subr.mxu0 0.0
    %754 = vmatpush1.msra.mxu0 0.0
    %755 = vmatprep.subr.mxu0 0.0
    %756 = vmatpush1.msra.mxu0 0.0
    %757 = vmatprep.subr.mxu0 0.0
    %758 = vmatpush1.msra.mxu0 0.0
    %759 = vmatprep.subr.mxu0 0.0
    %760 = vmatpush1.msra.mxu0 0.0
    %761 = vmatprep.subr.mxu0 0.0
    %762 = vmatpush1.msra.mxu0 0.0
    %763 = vmatprep.subr.mxu0 0.0
    %764 = vmatpush1.msra.mxu0 0.0
    %765 = vmatprep.subr.mxu0 0.0
    %766 = vmatpush1.msra.mxu0 0.0
    %767 = vmatprep.subr.mxu0 0.0
    %768 = vmatpush1.msra.mxu0 0.0
    %769 = vmatprep.subr.mxu0 0.0
    %770 = vmatpush1.msra.mxu0 0.0
    %771 = vmatprep.subr.mxu0 0.0
    %772 = vmatpush1.msra.mxu0 0.0
    %773 = vmatprep.subr.mxu0 0.0
    %774 = vmatpush1.msra.mxu0 0.0
    %775 = vmatprep.subr.mxu0 0.0
    %776 = vmatpush1.msra.mxu0 0.0
    %777 = vmatprep.mubr.f32.mxu0 0.0
    %778 = vmatmul.mubr.f32.gmra.mrb[0].mxu0 %v711
    %v779 = vpop.f32.mrb[0].mxu0
    %v780 = vadd.f32 0.0, %v779
    %v781 = vpop.f32.mrb[0].mxu0
    %v782 = vadd.f32 0.0, %v781
    %783 = vdwg.mxu0
    %v784 = vadd.f32 %v708, %v780
    %v785 = vadd.f32 %v709, %v782
    %v786 = vtanh.pop %v784
    %v787 = vtanh.pop %v785
    %v788 = vmul.f32 %v388, %v786
    %v789 = vmul.f32 %v389, %v787
    %v790 = vadd.f32 %v788, %v390
    %v791 = vadd.f32 %v789, %v391
    %v792 = vmul.f32 %v790, %v698
    %794 = vrot.lane.b32.xlu0 %v791, 64
    %v795 = vpop.permute.xlu0 %794
    %v797 = vmul.f32 %v790, %v795
    %799 = vrot.lane.b32.xlu0 %v797, 64
    %v800 = vpop.permute.xlu0 %799
    %v802 = vadd.f32 %v792, %v800
    %v803 = vtanh.pop %v802
    %805 = vrot.lane.b32.xlu0 %v803, 64
    %v806 = vpop.permute.xlu0 %805
    %v808 = vmul.f32 %v791, %v806
    %s809 = smul.u32 4, 2
    %s810 = smul.addr %s809, 8
    %s811 = scalar_lea.vmem [#allocation2], %s810
    %v812 = vld [vmem:[%s811] sm:$0xff]
    %v813 = vld [vmem:[%s811 + $0x8] sm:$0xff]
    %v815 = vsel %vm397, %v808, 0
    %817 = vmatprep.subr.mxu0 %v368
    %818 = vmatpush1.msra.mxu0 %v367
    %819 = vmatprep.subr.mxu0 %v370
    %820 = vmatpush1.msra.mxu0 %v369
    %821 = vmatprep.subr.mxu0 %v372
    %822 = vmatpush1.msra.mxu0 %v371
    %823 = vmatprep.subr.mxu0 %v374
    %824 = vmatpush1.msra.mxu0 %v373
    %825 = vmatprep.subr.mxu0 %v376
    %826 = vmatpush1.msra.mxu0 %v375
    %827 = vmatprep.subr.mxu0 %v378
    %828 = vmatpush1.msra.mxu0 %v377
    %829 = vmatprep.subr.mxu0 %v380
    %830 = vmatpush1.msra.mxu0 %v379
    %831 = vmatprep.subr.mxu0 %v382
    %832 = vmatpush1.msra.mxu0 %v381
    %833 = vmatprep.subr.mxu0 0.0
    %834 = vmatpush1.msra.mxu0 0.0
    %835 = vmatprep.subr.mxu0 0.0
    %836 = vmatpush1.msra.mxu0 0.0
    %837 = vmatprep.subr.mxu0 0.0
    %838 = vmatpush1.msra.mxu0 0.0
    %839 = vmatprep.subr.mxu0 0.0
    %840 = vmatpush1.msra.mxu0 0.0
    %841 = vmatprep.subr.mxu0 0.0
    %842 = vmatpush1.msra.mxu0 0.0
    %843 = vmatprep.subr.mxu0 0.0
    %844 = vmatpush1.msra.mxu0 0.0
    %845 = vmatprep.subr.mxu0 0.0
    %846 = vmatpush1.msra.mxu0 0.0
    %847 = vmatprep.subr.mxu0 0.0
    %848 = vmatpush1.msra.mxu0 0.0
    %849 = vmatprep.subr.mxu0 0.0
    %850 = vmatpush1.msra.mxu0 0.0
    %851 = vmatprep.subr.mxu0 0.0
    %852 = vmatpush1.msra.mxu0 0.0
    %853 = vmatprep.subr.mxu0 0.0
    %854 = vmatpush1.msra.mxu0 0.0
    %855 = vmatprep.subr.mxu0 0.0
    %856 = vmatpush1.msra.mxu0 0.0
    %857 = vmatprep.subr.mxu0 0.0
    %858 = vmatpush1.msra.mxu0 0.0
    %859 = vmatprep.subr.mxu0 0.0
    %860 = vmatpush1.msra.mxu0 0.0
    %861 = vmatprep.subr.mxu0 0.0
    %862 = vmatpush1.msra.mxu0 0.0
    %863 = vmatprep.subr.mxu0 0.0
    %864 = vmatpush1.msra.mxu0 0.0
    %865 = vmatprep.subr.mxu0 0.0
    %866 = vmatpush1.msra.mxu0 0.0
    %867 = vmatprep.subr.mxu0 0.0
    %868 = vmatpush1.msra.mxu0 0.0
    %869 = vmatprep.subr.mxu0 0.0
    %870 = vmatpush1.msra.mxu0 0.0
    %871 = vmatprep.subr.mxu0 0.0
    %872 = vmatpush1.msra.mxu0 0.0
    %873 = vmatprep.subr.mxu0 0.0
    %874 = vmatpush1.msra.mxu0 0.0
    %875 = vmatprep.subr.mxu0 0.0
    %876 = vmatpush1.msra.mxu0 0.0
    %877 = vmatprep.subr.mxu0 0.0
    %878 = vmatpush1.msra.mxu0 0.0
    %879 = vmatprep.subr.mxu0 0.0
    %880 = vmatpush1.msra.mxu0 0.0
    %881 = vmatprep.mubr.f32.mxu0 0.0
    %882 = vmatmul.mubr.f32.gmra.mrb[0].mxu0 %v815
    %v883 = vpop.f32.mrb[0].mxu0
    %v884 = vadd.f32 0.0, %v883
    %v885 = vpop.f32.mrb[0].mxu0
    %v886 = vadd.f32 0.0, %v885
    %887 = vdwg.mxu0
    %v888 = vadd.f32 %v812, %v884
    %v889 = vadd.f32 %v813, %v886
    %v890 = vtanh.pop %v888
    %v891 = vtanh.pop %v889
    %v892 = vmul.f32 %v388, %v890
    %v893 = vmul.f32 %v389, %v891
    %v894 = vadd.f32 %v892, %v390
    %v895 = vadd.f32 %v893, %v391
    %v896 = vmul.f32 %v894, %v802
    %898 = vrot.lane.b32.xlu0 %v895, 64
    %v899 = vpop.permute.xlu0 %898
    %v901 = vmul.f32 %v894, %v899
    %903 = vrot.lane.b32.xlu0 %v901, 64
    %v904 = vpop.permute.xlu0 %903
    %v906 = vadd.f32 %v896, %v904
    %v907 = vtanh.pop %v906
    %909 = vrot.lane.b32.xlu0 %v907, 64
    %v910 = vpop.permute.xlu0 %909
    %v912 = vmul.f32 %v895, %v910
    %s913 = smul.u32 5, 2
    %s914 = smul.addr %s913, 8
    %s915 = scalar_lea.vmem [#allocation2], %s914
    %v916 = vld [vmem:[%s915] sm:$0xff]
    %v917 = vld [vmem:[%s915 + $0x8] sm:$0xff]
    %v919 = vsel %vm397, %v912, 0
    %921 = vmatprep.subr.mxu0 %v368
    %922 = vmatpush1.msra.mxu0 %v367
    %923 = vmatprep.subr.mxu0 %v370
    %924 = vmatpush1.msra.mxu0 %v369
    %925 = vmatprep.subr.mxu0 %v372
    %926 = vmatpush1.msra.mxu0 %v371
    %927 = vmatprep.subr.mxu0 %v374
    %928 = vmatpush1.msra.mxu0 %v373
    %929 = vmatprep.subr.mxu0 %v376
    %930 = vmatpush1.msra.mxu0 %v375
    %931 = vmatprep.subr.mxu0 %v378
    %932 = vmatpush1.msra.mxu0 %v377
    %933 = vmatprep.subr.mxu0 %v380
    %934 = vmatpush1.msra.mxu0 %v379
    %935 = vmatprep.subr.mxu0 %v382
    %936 = vmatpush1.msra.mxu0 %v381
    %937 = vmatprep.subr.mxu0 0.0
    %938 = vmatpush1.msra.mxu0 0.0
    %939 = vmatprep.subr.mxu0 0.0
    %940 = vmatpush1.msra.mxu0 0.0
    %941 = vmatprep.subr.mxu0 0.0
    %942 = vmatpush1.msra.mxu0 0.0
    %943 = vmatprep.subr.mxu0 0.0
    %944 = vmatpush1.msra.mxu0 0.0
    %945 = vmatprep.subr.mxu0 0.0
    %946 = vmatpush1.msra.mxu0 0.0
    %947 = vmatprep.subr.mxu0 0.0
    %948 = vmatpush1.msra.mxu0 0.0
    %949 = vmatprep.subr.mxu0 0.0
    %950 = vmatpush1.msra.mxu0 0.0
    %951 = vmatprep.subr.mxu0 0.0
    %952 = vmatpush1.msra.mxu0 0.0
    %953 = vmatprep.subr.mxu0 0.0
    %954 = vmatpush1.msra.mxu0 0.0
    %955 = vmatprep.subr.mxu0 0.0
    %956 = vmatpush1.msra.mxu0 0.0
    %957 = vmatprep.subr.mxu0 0.0
    %958 = vmatpush1.msra.mxu0 0.0
    %959 = vmatprep.subr.mxu0 0.0
    %960 = vmatpush1.msra.mxu0 0.0
    %961 = vmatprep.subr.mxu0 0.0
    %962 = vmatpush1.msra.mxu0 0.0
    %963 = vmatprep.subr.mxu0 0.0
    %964 = vmatpush1.msra.mxu0 0.0
    %965 = vmatprep.subr.mxu0 0.0
    %966 = vmatpush1.msra.mxu0 0.0
    %967 = vmatprep.subr.mxu0 0.0
    %968 = vmatpush1.msra.mxu0 0.0
    %969 = vmatprep.subr.mxu0 0.0
    %970 = vmatpush1.msra.mxu0 0.0
    %971 = vmatprep.subr.mxu0 0.0
    %972 = vmatpush1.msra.mxu0 0.0
    %973 = vmatprep.subr.mxu0 0.0
    %974 = vmatpush1.msra.mxu0 0.0
    %975 = vmatprep.subr.mxu0 0.0
    %976 = vmatpush1.msra.mxu0 0.0
    %977 = vmatprep.subr.mxu0 0.0
    %978 = vmatpush1.msra.mxu0 0.0
    %979 = vmatprep.subr.mxu0 0.0
    %980 = vmatpush1.msra.mxu0 0.0
    %981 = vmatprep.subr.mxu0 0.0
    %982 = vmatpush1.msra.mxu0 0.0
    %983 = vmatprep.subr.mxu0 0.0
    %984 = vmatpush1.msra.mxu0 0.0
    %985 = vmatprep.mubr.f32.mxu0 0.0
    %986 = vmatmul.mubr.f32.gmra.mrb[0].mxu0 %v919
    %v987 = vpop.f32.mrb[0].mxu0
    %v988 = vadd.f32 0.0, %v987
    %v989 = vpop.f32.mrb[0].mxu0
    %v990 = vadd.f32 0.0, %v989
    %991 = vdwg.mxu0
    %v992 = vadd.f32 %v916, %v988
    %v993 = vadd.f32 %v917, %v990
    %v994 = vtanh.pop %v992
    %v995 = vtanh.pop %v993
    %v996 = vmul.f32 %v388, %v994
    %v997 = vmul.f32 %v389, %v995
    %v998 = vadd.f32 %v996, %v390
    %v999 = vadd.f32 %v997, %v391
    %v1000 = vmul.f32 %v998, %v906
    %1002 = vrot.lane.b32.xlu0 %v999, 64
    %v1003 = vpop.permute.xlu0 %1002
    %v1005 = vmul.f32 %v998, %v1003
    %1007 = vrot.lane.b32.xlu0 %v1005, 64
    %v1008 = vpop.permute.xlu0 %1007
    %v1010 = vadd.f32 %v1000, %v1008
    %v1011 = vtanh.pop %v1010
    %1013 = vrot.lane.b32.xlu0 %v1011, 64
    %v1014 = vpop.permute.xlu0 %1013
    %v1016 = vmul.f32 %v999, %v1014
    %s1017 = smul.u32 6, 2
    %s1018 = smul.addr %s1017, 8
    %s1019 = scalar_lea.vmem [#allocation2], %s1018
    %v1020 = vld [vmem:[%s1019] sm:$0xff]
    %v1021 = vld [vmem:[%s1019 + $0x8] sm:$0xff]
    %v1023 = vsel %vm397, %v1016, 0
    %1025 = vmatprep.subr.mxu0 %v368
    %1026 = vmatpush1.msra.mxu0 %v367
    %1027 = vmatprep.subr.mxu0 %v370
    %1028 = vmatpush1.msra.mxu0 %v369
    %1029 = vmatprep.subr.mxu0 %v372
    %1030 = vmatpush1.msra.mxu0 %v371
    %1031 = vmatprep.subr.mxu0 %v374
    %1032 = vmatpush1.msra.mxu0 %v373
    %1033 = vmatprep.subr.mxu0 %v376
    %1034 = vmatpush1.msra.mxu0 %v375
    %1035 = vmatprep.subr.mxu0 %v378
    %1036 = vmatpush1.msra.mxu0 %v377
    %1037 = vmatprep.subr.mxu0 %v380
    %1038 = vmatpush1.msra.mxu0 %v379
    %1039 = vmatprep.subr.mxu0 %v382
    %1040 = vmatpush1.msra.mxu0 %v381
    %1041 = vmatprep.subr.mxu0 0.0
    %1042 = vmatpush1.msra.mxu0 0.0
    %1043 = vmatprep.subr.mxu0 0.0
    %1044 = vmatpush1.msra.mxu0 0.0
    %1045 = vmatprep.subr.mxu0 0.0
    %1046 = vmatpush1.msra.mxu0 0.0
    %1047 = vmatprep.subr.mxu0 0.0
    %1048 = vmatpush1.msra.mxu0 0.0
    %1049 = vmatprep.subr.mxu0 0.0
    %1050 = vmatpush1.msra.mxu0 0.0
    %1051 = vmatprep.subr.mxu0 0.0
    %1052 = vmatpush1.msra.mxu0 0.0
    %1053 = vmatprep.subr.mxu0 0.0
    %1054 = vmatpush1.msra.mxu0 0.0
    %1055 = vmatprep.subr.mxu0 0.0
    %1056 = vmatpush1.msra.mxu0 0.0
    %1057 = vmatprep.subr.mxu0 0.0
    %1058 = vmatpush1.msra.mxu0 0.0
    %1059 = vmatprep.subr.mxu0 0.0
    %1060 = vmatpush1.msra.mxu0 0.0
    %1061 = vmatprep.subr.mxu0 0.0
    %1062 = vmatpush1.msra.mxu0 0.0
    %1063 = vmatprep.subr.mxu0 0.0
    %1064 = vmatpush1.msra.mxu0 0.0
    %1065 = vmatprep.subr.mxu0 0.0
    %1066 = vmatpush1.msra.mxu0 0.0
    %1067 = vmatprep.subr.mxu0 0.0
    %1068 = vmatpush1.msra.mxu0 0.0
    %1069 = vmatprep.subr.mxu0 0.0
    %1070 = vmatpush1.msra.mxu0 0.0
    %1071 = vmatprep.subr.mxu0 0.0
    %1072 = vmatpush1.msra.mxu0 0.0
    %1073 = vmatprep.subr.mxu0 0.0
    %1074 = vmatpush1.msra.mxu0 0.0
    %1075 = vmatprep.subr.mxu0 0.0
    %1076 = vmatpush1.msra.mxu0 0.0
    %1077 = vmatprep.subr.mxu0 0.0
    %1078 = vmatpush1.msra.mxu0 0.0
    %1079 = vmatprep.subr.mxu0 0.0
    %1080 = vmatpush1.msra.mxu0 0.0
    %1081 = vmatprep.subr.mxu0 0.0
    %1082 = vmatpush1.msra.mxu0 0.0
    %1083 = vmatprep.subr.mxu0 0.0
    %1084 = vmatpush1.msra.mxu0 0.0
    %1085 = vmatprep.subr.mxu0 0.0
    %1086 = vmatpush1.msra.mxu0 0.0
    %1087 = vmatprep.subr.mxu0 0.0
    %1088 = vmatpush1.msra.mxu0 0.0
    %1089 = vmatprep.mubr.f32.mxu0 0.0
    %1090 = vmatmul.mubr.f32.gmra.mrb[0].mxu0 %v1023
    %v1091 = vpop.f32.mrb[0].mxu0
    %v1092 = vadd.f32 0.0, %v1091
    %v1093 = vpop.f32.mrb[0].mxu0
    %v1094 = vadd.f32 0.0, %v1093
    %1095 = vdwg.mxu0
    %v1096 = vadd.f32 %v1020, %v1092
    %v1097 = vadd.f32 %v1021, %v1094
    %v1098 = vtanh.pop %v1096
    %v1099 = vtanh.pop %v1097
    %v1100 = vmul.f32 %v388, %v1098
    %v1101 = vmul.f32 %v389, %v1099
    %v1102 = vadd.f32 %v1100, %v390
    %v1103 = vadd.f32 %v1101, %v391
    %v1104 = vmul.f32 %v1102, %v1010
    %1106 = vrot.lane.b32.xlu0 %v1103, 64
    %v1107 = vpop.permute.xlu0 %1106
    %v1109 = vmul.f32 %v1102, %v1107
    %1111 = vrot.lane.b32.xlu0 %v1109, 64
    %v1112 = vpop.permute.xlu0 %1111
    %v1114 = vadd.f32 %v1104, %v1112
    %v1115 = vtanh.pop %v1114
    %1117 = vrot.lane.b32.xlu0 %v1115, 64
    %v1118 = vpop.permute.xlu0 %1117
    %v1120 = vmul.f32 %v1103, %v1118
    %s1121 = smul.u32 7, 2
    %s1122 = smul.addr %s1121, 8
    %s1123 = scalar_lea.vmem [#allocation2], %s1122
    %v1124 = vld [vmem:[%s1123] sm:$0xff]
    %v1125 = vld [vmem:[%s1123 + $0x8] sm:$0xff]
    %v1127 = vsel %vm397, %v1120, 0
    %1129 = vmatprep.subr.mxu0 %v368
    %1130 = vmatpush1.msra.mxu0 %v367
    %1131 = vmatprep.subr.mxu0 %v370
    %1132 = vmatpush1.msra.mxu0 %v369
    %1133 = vmatprep.subr.mxu0 %v372
    %1134 = vmatpush1.msra.mxu0 %v371
    %1135 = vmatprep.subr.mxu0 %v374
    %1136 = vmatpush1.msra.mxu0 %v373
    %1137 = vmatprep.subr.mxu0 %v376
    %1138 = vmatpush1.msra.mxu0 %v375
    %1139 = vmatprep.subr.mxu0 %v378
    %1140 = vmatpush1.msra.mxu0 %v377
    %1141 = vmatprep.subr.mxu0 %v380
    %1142 = vmatpush1.msra.mxu0 %v379
    %1143 = vmatprep.subr.mxu0 %v382
    %1144 = vmatpush1.msra.mxu0 %v381
    %1145 = vmatprep.subr.mxu0 0.0
    %1146 = vmatpush1.msra.mxu0 0.0
    %1147 = vmatprep.subr.mxu0 0.0
    %1148 = vmatpush1.msra.mxu0 0.0
    %1149 = vmatprep.subr.mxu0 0.0
    %1150 = vmatpush1.msra.mxu0 0.0
    %1151 = vmatprep.subr.mxu0 0.0
    %1152 = vmatpush1.msra.mxu0 0.0
    %1153 = vmatprep.subr.mxu0 0.0
    %1154 = vmatpush1.msra.mxu0 0.0
    %1155 = vmatprep.subr.mxu0 0.0
    %1156 = vmatpush1.msra.mxu0 0.0
    %1157 = vmatprep.subr.mxu0 0.0
    %1158 = vmatpush1.msra.mxu0 0.0
    %1159 = vmatprep.subr.mxu0 0.0
    %1160 = vmatpush1.msra.mxu0 0.0
    %1161 = vmatprep.subr.mxu0 0.0
    %1162 = vmatpush1.msra.mxu0 0.0
    %1163 = vmatprep.subr.mxu0 0.0
    %1164 = vmatpush1.msra.mxu0 0.0
    %1165 = vmatprep.subr.mxu0 0.0
    %1166 = vmatpush1.msra.mxu0 0.0
    %1167 = vmatprep.subr.mxu0 0.0
    %1168 = vmatpush1.msra.mxu0 0.0
    %1169 = vmatprep.subr.mxu0 0.0
    %1170 = vmatpush1.msra.mxu0 0.0
    %1171 = vmatprep.subr.mxu0 0.0
    %1172 = vmatpush1.msra.mxu0 0.0
    %1173 = vmatprep.subr.mxu0 0.0
    %1174 = vmatpush1.msra.mxu0 0.0
    %1175 = vmatprep.subr.mxu0 0.0
    %1176 = vmatpush1.msra.mxu0 0.0
    %1177 = vmatprep.subr.mxu0 0.0
    %1178 = vmatpush1.msra.mxu0 0.0
    %1179 = vmatprep.subr.mxu0 0.0
    %1180 = vmatpush1.msra.mxu0 0.0
    %1181 = vmatprep.subr.mxu0 0.0
    %1182 = vmatpush1.msra.mxu0 0.0
    %1183 = vmatprep.subr.mxu0 0.0
    %1184 = vmatpush1.msra.mxu0 0.0
    %1185 = vmatprep.subr.mxu0 0.0
    %1186 = vmatpush1.msra.mxu0 0.0
    %1187 = vmatprep.subr.mxu0 0.0
    %1188 = vmatpush1.msra.mxu0 0.0
    %1189 = vmatprep.subr.mxu0 0.0
    %1190 = vmatpush1.msra.mxu0 0.0
    %1191 = vmatprep.subr.mxu0 0.0
    %1192 = vmatpush1.msra.mxu0 0.0
    %1193 = vmatprep.mubr.f32.mxu0 0.0
    %1194 = vmatmul.mubr.f32.gmra.mrb[0].mxu0 %v1127
    %v1195 = vpop.f32.mrb[0].mxu0
    %v1196 = vadd.f32 0.0, %v1195
    %v1197 = vpop.f32.mrb[0].mxu0
    %v1198 = vadd.f32 0.0, %v1197
    %1199 = vdwg.mxu0
    %v1200 = vadd.f32 %v1124, %v1196
    %v1201 = vadd.f32 %v1125, %v1198
    %v1202 = vtanh.pop %v1200
    %v1203 = vtanh.pop %v1201
    %v1204 = vmul.f32 %v388, %v1202
    %v1205 = vmul.f32 %v389, %v1203
    %v1206 = vadd.f32 %v1204, %v390
    %v1207 = vadd.f32 %v1205, %v391
    %v1208 = vmul.f32 %v1206, %v1114
    %1210 = vrot.lane.b32.xlu0 %v1207, 64
    %v1211 = vpop.permute.xlu0 %1210
    %v1213 = vmul.f32 %v1206, %v1211
    %1215 = vrot.lane.b32.xlu0 %v1213, 64
    %v1216 = vpop.permute.xlu0 %1215
    %v1218 = vadd.f32 %v1208, %v1216
    %v1219 = vtanh.pop %v1218
    %1221 = vrot.lane.b32.xlu0 %v1219, 64
    %v1222 = vpop.permute.xlu0 %1221
    %v1224 = vmul.f32 %v1207, %v1222
    %v1225 = vld [vmem:[%s6] sm:$0xff]
    %v1226 = vld [vmem:[%s6 + $0x8] sm:$0xff]
    %v1227 = vld [vmem:[%s6 + $0x10] sm:$0xff]
    %v1228 = vld [vmem:[%s6 + $0x18] sm:$0xff]
    %v1229 = vld [vmem:[%s6 + $0x20] sm:$0xff]
    %v1230 = vld [vmem:[%s6 + $0x28] sm:$0xff]
    %v1231 = vld [vmem:[%s6 + $0x30] sm:$0xff]
    %v1232 = vld [vmem:[%s6 + $0x38] sm:$0xff]
    %v1233 = vld [vmem:[%s7] sm:$0x1]
    %v1235 = vlaneseq
    %v1236 = vshrl.u32 %v1235, 7
    %v1237 = vsub.s32 0, %v1236
    %v1238 = vrot.slane %v1233, %v1237
    %v1241 = vsel %vm397, %v1224, 0
    %1243 = vmatprep.subr.mxu0 0.0
    %1244 = vmatpush1.msra.mxu0 %v1225
    %1245 = vmatprep.subr.mxu0 0.0
    %1246 = vmatpush1.msra.mxu0 %v1226
    %1247 = vmatprep.subr.mxu0 0.0
    %1248 = vmatpush1.msra.mxu0 %v1227
    %1249 = vmatprep.subr.mxu0 0.0
    %1250 = vmatpush1.msra.mxu0 %v1228
    %1251 = vmatprep.subr.mxu0 0.0
    %1252 = vmatpush1.msra.mxu0 %v1229
    %1253 = vmatprep.subr.mxu0 0.0
    %1254 = vmatpush1.msra.mxu0 %v1230
    %1255 = vmatprep.subr.mxu0 0.0
    %1256 = vmatpush1.msra.mxu0 %v1231
    %1257 = vmatprep.subr.mxu0 0.0
    %1258 = vmatpush1.msra.mxu0 %v1232
    %1259 = vmatprep.subr.mxu0 0.0
    %1260 = vmatpush1.msra.mxu0 0.0
    %1261 = vmatprep.subr.mxu0 0.0
    %1262 = vmatpush1.msra.mxu0 0.0
    %1263 = vmatprep.subr.mxu0 0.0
    %1264 = vmatpush1.msra.mxu0 0.0
    %1265 = vmatprep.subr.mxu0 0.0
    %1266 = vmatpush1.msra.mxu0 0.0
    %1267 = vmatprep.subr.mxu0 0.0
    %1268 = vmatpush1.msra.mxu0 0.0
    %1269 = vmatprep.subr.mxu0 0.0
    %1270 = vmatpush1.msra.mxu0 0.0
    %1271 = vmatprep.subr.mxu0 0.0
    %1272 = vmatpush1.msra.mxu0 0.0
    %1273 = vmatprep.subr.mxu0 0.0
    %1274 = vmatpush1.msra.mxu0 0.0
    %1275 = vmatprep.subr.mxu0 0.0
    %1276 = vmatpush1.msra.mxu0 0.0
    %1277 = vmatprep.subr.mxu0 0.0
    %1278 = vmatpush1.msra.mxu0 0.0
    %1279 = vmatprep.subr.mxu0 0.0
    %1280 = vmatpush1.msra.mxu0 0.0
    %1281 = vmatprep.subr.mxu0 0.0
    %1282 = vmatpush1.msra.mxu0 0.0
    %1283 = vmatprep.subr.mxu0 0.0
    %1284 = vmatpush1.msra.mxu0 0.0
    %1285 = vmatprep.subr.mxu0 0.0
    %1286 = vmatpush1.msra.mxu0 0.0
    %1287 = vmatprep.subr.mxu0 0.0
    %1288 = vmatpush1.msra.mxu0 0.0
    %1289 = vmatprep.subr.mxu0 0.0
    %1290 = vmatpush1.msra.mxu0 0.0
    %1291 = vmatprep.subr.mxu0 0.0
    %1292 = vmatpush1.msra.mxu0 0.0
    %1293 = vmatprep.subr.mxu0 0.0
    %1294 = vmatpush1.msra.mxu0 0.0
    %1295 = vmatprep.subr.mxu0 0.0
    %1296 = vmatpush1.msra.mxu0 0.0
    %1297 = vmatprep.subr.mxu0 0.0
    %1298 = vmatpush1.msra.mxu0 0.0
    %1299 = vmatprep.subr.mxu0 0.0
    %1300 = vmatpush1.msra.mxu0 0.0
    %1301 = vmatprep.subr.mxu0 0.0
    %1302 = vmatpush1.msra.mxu0 0.0
    %1303 = vmatprep.subr.mxu0 0.0
    %1304 = vmatpush1.msra.mxu0 0.0
    %1305 = vmatprep.subr.mxu0 0.0
    %1306 = vmatpush1.msra.mxu0 0.0
    %1307 = vmatprep.mubr.f32.mxu0 0.0
    %1308 = vmatmul.mubr.f32.gmra.mrb[0].mxu0 %v1241
    %v1309 = vpop.f32.mrb[0].mxu0
    %v1310 = vadd.f32 %v1238, %v1309
    %v1311 = vpop.f32.mrb[0].mxu0
    %1312 = vdwg.mxu0
    %1313 = vst [vmem:[%s8] sm:$0xff] %v1310
    // Predicated region
    $region38: #{discriminator_forward.1} parent=1 // pred_check
      _
    $region39: #{discriminator_forward.1} parent=1 // pred_check_branch
      %1315 = sbr.rel (0) target = $region41
    $region40: #{discriminator_forward.1} parent=1 // pred_region
      _
    $region41: #{discriminator_forward.1} parent=1 // pred_fallthru
      _
    // Predicated region
    $region42: #{discriminator_forward.1} parent=1 // pred_check
      _
    $region43: #{discriminator_forward.1} parent=1 // pred_check_branch
      %1317 = sbr.rel (0) target = $region45
    $region44: #{discriminator_forward.1} parent=1 // pred_region
      _
    $region45: #{discriminator_forward.1} parent=1 // pred_fallthru
      _
    %1318 = vsyncpa [#allocation4], 1

</llo_original>
